<compile_context>
chip_gen: v7x
topology: tpu7x:2x2x1
jax: 0.10.0
libtpu: 0.0.40
codegen_flags: <defaults>
</compile_context>

<pallas_src>
import functools
import numpy as np
import jax
import jax.numpy as jnp
from jax import lax
from jax.experimental import pallas as pl
from jax.experimental.pallas import tpu as pltpu


# ----------------------------------------------------------------------------
# Pallas kernel: one grid step == one batch element, everything 2-D in VMEM
# ----------------------------------------------------------------------------
def task_recurrent_encoder_kernel(
    state_ref,   # (1, ne, KD)  bf16  zero-padded state features
    bias_ref,    # (1, ne, ne)  f32   additive attention mask (0 / -1e30)
    rowok_ref,   # (1, ne, 1)   f32   1.0 unless attention row is fully masked
    keep_ref,    # (1, ne, 1)   f32   1.0 unless scenario-masked
    ginit_ref,   # (1, 1, P)    f32   bih + reward-encoder gate contribution
    hprev_ref,   # (1, ne, KH)  f32
    wse_ref,     # (KD, P)      bf16  state encoder
    wfu_ref,     # (P, 4P)      bf16  fused [q | k | v | gru-x(embed)] lane groups
    watt_ref,    # (KA, P)      bf16  atten -> GRU x-gates
    whh_ref,     # (KH, P)      bf16  hidden -> GRU h-gates
    wout_ref,    # (KH, P)      bf16  output head
    b_ref,       # (8, 4P)      f32   bias slab
    h_out_ref,   # (1, ne, H)   f32
    p_out_ref,   # (1, ne, P)   f32
    *, hidden_dim, n_heads, head_dim, pad):
  H, nh, e, P = hidden_dim, n_heads, head_dim, pad
  A = nh * e
  G = 3 * H
  f32, bf16 = jnp.float32, jnp.bfloat16
  n_rows = state_ref.shape[1]

  x = state_ref[0]            # (ne, KD) bf16
  attn_bias = bias_ref[0]     # (ne, ne) f32
  row_ok = rowok_ref[0]       # (ne, 1)  f32
  keep = keep_ref[0]          # (ne, 1)  f32
  g_init = ginit_ref[0]       # (1, P)   f32
  hprev = hprev_ref[0]        # (ne, KH) f32
  b = b_ref[...]              # (8, 4P)  f32

  # ---- state encoder: Linear + ReLU (lanes H:P are zero by construction) ----
  embed = jnp.maximum(
      jnp.dot(x, wse_ref[...], preferred_element_type=f32) + b[0:1, :P], 0.0)   # (ne, P)

  # ---- fused projection: q | k | v | gru-x(embed), one MXU pass --------------
  fused = jnp.dot(embed.astype(bf16), wfu_ref[...],
                  preferred_element_type=f32) + b[1:2, :]                        # (ne, 4P)

  v_all = jnp.maximum(fused[:, 2 * P:3 * P], 0.0)                                # (ne, P)

  # ---- multi-head attention (per-batch (ne, ne), additive-bias masking) ------
  att_heads = []
  for h in range(nh):
    lo = h * e
    q_h = fused[:, lo:lo + e]               # Wq/bq pre-scaled by 1/sqrt(e)
    k_h = fused[:, P + lo:P + lo + e]
    v_h = v_all[:, lo:lo + e]
    s = lax.dot_general(q_h, k_h, (((1,), (1,)), ((), ())),
                        preferred_element_type=f32) + attn_bias                  # (ne, ne)
    m = jnp.max(s, axis=-1, keepdims=True)
    ex = jnp.exp(s - m)                     # masked entries underflow to 0
    w = ex * pl.reciprocal(jnp.sum(ex, axis=-1, keepdims=True), approx=True)
    att_heads.append(jnp.dot(w, v_h, preferred_element_type=f32))                # (ne, e)
  katt = watt_ref.shape[0]
  if katt > A:                                           # static, no-op here
    att_heads.append(jnp.zeros((n_rows, katt - A), f32))
  # row_ok zeroes fully-masked rows (reference NaN->0 semantics), applied once.
  att_all = jnp.concatenate(att_heads, axis=-1) * row_ok                         # (ne, KA)

  # ---- GRU gates: single att matmul + resident h-gate matmul -----------------
  gates_x = (fused[:, 3 * P:] + g_init
             + jnp.dot(att_all.astype(bf16), watt_ref[...],
                       preferred_element_type=f32))                              # (ne, P)
  gates_h = jnp.dot(hprev.astype(bf16), whh_ref[...],
                    preferred_element_type=f32) + b[2:3, :P]                     # (ne, P)

  r = jax.nn.sigmoid(gates_x[:, :H] + gates_h[:, :H])
  z = jax.nn.sigmoid(gates_x[:, H:2 * H] + gates_h[:, H:2 * H])
  n = jnp.tanh(gates_x[:, 2 * H:G] + r * gates_h[:, 2 * H:G])
  h_new = (1.0 - z) * n + z * hprev[:, :H]                                       # (ne, H) f32

  # ---- scenario masking + output head, two direct stores ---------------------
  h_masked = h_new * keep
  h_out_ref[0] = h_masked

  kout = wout_ref.shape[0]
  h_in = h_masked if kout == H else jnp.concatenate(
      [h_masked, jnp.zeros((n_rows, kout - H), f32)], axis=-1)
  params = (jnp.dot(h_in.astype(bf16), wout_ref[...],
                    preferred_element_type=f32) + b[3:4, :P]) * keep
  p_out_ref[0] = params                                                          # (ne, P)


# ----------------------------------------------------------------------------
# Wrapper: per-batch operands, batch grid, resident weights
# ----------------------------------------------------------------------------
def task_recurrent_encoder_forward(state, pre_rew, obs_mask, scenario_mask,
                                   pre_hidden, packed, cfg):
  bs, ne, D = state.shape
  na, nh, e = cfg['n_agents'], cfg['n_heads'], cfg['head_dim']
  H, Od = cfg['hidden_dim'], cfg['out_dim']
  A, G = nh * e, 3 * H
  P, KD, KH, KA = packed['P'], packed['KD'], packed['KH'], packed['KA']
  f32, bf16 = jnp.float32, jnp.bfloat16

  # Per-batch data operands.
  state_p = jnp.zeros((bs, ne, KD), bf16).at[:, :, :D].set(state.astype(bf16))

  diag = jnp.pad(jnp.eye(na, dtype=bool), ((0, ne - na), (0, ne - na)))          # (ne, ne)
  masked = obs_mask.astype(bool) | diag[None]                                    # (bs, ne, ne)
  attn_bias = jnp.where(masked, jnp.float32(-1e30), jnp.float32(0.0))            # additive
  row_ok = jnp.logical_not(jnp.all(masked, axis=-1, keepdims=True)).astype(f32)  # (bs, ne, 1)
  keep = (scenario_mask == 0).astype(f32)[..., None]                             # (bs, ne, 1)

  hprev_rows = jnp.zeros((bs, ne, KH), f32).at[:, :na, :H].set(pre_hidden.astype(f32))

  # Reward encoder + bih folded into a per-batch GRU x-gate initializer.
  embed_rew = jax.nn.relu(pre_rew.astype(f32) @ packed['Wrew_T'] + packed['brew'])
  g_rows = packed['bih'][None, :] + embed_rew @ packed['wih_rew_T']              # (bs, G)
  g_init = jnp.zeros((bs, 1, P), f32).at[:, 0, :G].set(g_rows)

  kern = functools.partial(task_recurrent_encoder_kernel,
                           hidden_dim=H, n_heads=nh, head_dim=e, pad=P)

  batch_map = lambda b: (b, 0, 0)
  fixed2 = lambda b: (0, 0)

  in_specs = [
      pl.BlockSpec((1, ne, KD), batch_map),      # state
      pl.BlockSpec((1, ne, ne), batch_map),      # attention additive bias
      pl.BlockSpec((1, ne, 1), batch_map),       # row_ok
      pl.BlockSpec((1, ne, 1), batch_map),       # agent keep
      pl.BlockSpec((1, 1, P), batch_map),        # gate initializer
      pl.BlockSpec((1, ne, KH), batch_map),      # previous hidden
      pl.BlockSpec((KD, P), fixed2),             # w_se      (resident)
      pl.BlockSpec((P, 4 * P), fixed2),          # w_fused   (resident)
      pl.BlockSpec((KA, P), fixed2),             # w_att     (resident)
      pl.BlockSpec((KH, P), fixed2),             # w_hh      (resident)
      pl.BlockSpec((KH, P), fixed2),             # w_out     (resident)
      pl.BlockSpec((8, 4 * P), fixed2),          # bias slab (resident)
  ]
  out_specs = (pl.BlockSpec((1, ne, H), batch_map),
               pl.BlockSpec((1, ne, P), batch_map))
  out_shape = (jax.ShapeDtypeStruct((bs, ne, H), f32),
               jax.ShapeDtypeStruct((bs, ne, P), f32))

  # Advisory cost estimate.
  fl = (2 * ne * KD * P + 2 * ne * P * 4 * P + nh * 4 * ne * ne * e
        + 2 * ne * KA * P + 4 * ne * KH * P)
  transc = bs * (nh * ne * ne + 3 * ne * H)
  nbytes = int(2 * state_p.size
               + 4 * (attn_bias.size + row_ok.size + keep.size + g_init.size
                      + hprev_rows.size + packed['b_slab'].size)
               + 2 * (packed['w_se'].size + packed['w_fused'].size + packed['w_att'].size
                      + packed['w_hh'].size + packed['w_out'].size)
               + 4 * (bs * ne * H + bs * ne * P))

  h_full, p_full = pl.pallas_call(
      kern,
      grid=(bs,),
      in_specs=in_specs,
      out_specs=out_specs,
      out_shape=out_shape,
      compiler_params=pltpu.CompilerParams(dimension_semantics=("parallel",)),
      cost_estimate=pl.CostEstimate(flops=bs * fl, transcendentals=transc,
                                    bytes_accessed=nbytes),
  )(state_p, attn_bias, row_ok, keep, g_init, hprev_rows,
    packed['w_se'], packed['w_fused'], packed['w_att'], packed['w_hh'],
    packed['w_out'], packed['b_slab'])

  h = h_full[:, :na, :]                 # keep agent rows only
  params = p_full[:, :na, :Od]
  return params, h


# ----------------------------------------------------------------------------
# Parameter init (PyTorch-style) + packing into full-tile bf16 operands
# ----------------------------------------------------------------------------
def init_full_params(key, cfg):
  D, H, nh, e = cfg['input_dim'], cfg['hidden_dim'], cfg['n_heads'], cfg['head_dim']
  A, R, Od = nh * e, cfg['rew_dim'], cfg['out_dim']
  in_gru = H + A + R

  def linear(k, fin, fout):
    k1, k2 = jax.random.split(k)
    b = 1.0 / np.sqrt(fin)
    W = jax.random.uniform(k1, (fout, fin), jnp.float32, -b, b)   # torch (out, in)
    bias = jax.random.uniform(k2, (fout,), jnp.float32, -b, b)
    return W, bias

  ks = jax.random.split(key, 7)
  Wse, bse = linear(ks[0], D, H)
  Wq, bq = linear(ks[1], H, A)
  Wk, bk = linear(ks[2], H, A)
  Wv, bv = linear(ks[3], H, A)
  Wrew, brew = linear(ks[4], 1, R)
  bnd = 1.0 / np.sqrt(H)
  kg = jax.random.split(ks[5], 4)
  Wih = jax.random.uniform(kg[0], (3 * H, in_gru), jnp.float32, -bnd, bnd)
  bih = jax.random.uniform(kg[1], (3 * H,), jnp.float32, -bnd, bnd)
  Whh = jax.random.uniform(kg[2], (3 * H, H), jnp.float32, -bnd, bnd)
  bhh = jax.random.uniform(kg[3], (3 * H,), jnp.float32, -bnd, bnd)
  Wout, bout = linear(ks[6], H, Od)
  return dict(Wse=Wse, bse=bse, Wq=Wq, bq=bq, Wk=Wk, bk=bk, Wv=Wv, bv=bv,
              Wrew=Wrew, brew=brew, Wih=Wih, bih=bih, Whh=Whh, bhh=bhh,
              Wout=Wout, bout=bout)


def pack_params(fp, cfg):
  D, H, nh, e = cfg['input_dim'], cfg['hidden_dim'], cfg['n_heads'], cfg['head_dim']
  A, R, Od = nh * e, cfg['rew_dim'], cfg['out_dim']
  G = 3 * H
  rup = lambda v, m: ((v + m - 1) // m) * m
  KD, KH, KA = rup(D, 8), rup(H, 8), rup(A, 8)
  P = rup(max(H, A, G, Od), 128)
  inv_scale = np.float32(1.0 / np.sqrt(e))
  f32, bf16 = jnp.float32, jnp.bfloat16

  w_se = jnp.zeros((KD, P), f32).at[:D, :H].set(fp['Wse'].T)

  # Fused [q_all | k_all | v_all | gru-x(embed)] weight; 1/sqrt(e) folded into q.
  w_fused = jnp.zeros((P, 4 * P), f32)
  w_fused = w_fused.at[:H, 0:A].set(fp['Wq'].T * inv_scale)
  w_fused = w_fused.at[:H, P:P + A].set(fp['Wk'].T)
  w_fused = w_fused.at[:H, 2 * P:2 * P + A].set(fp['Wv'].T)
  w_fused = w_fused.at[:H, 3 * P:3 * P + G].set(fp['Wih'][:, :H].T)

  w_att = jnp.zeros((KA, P), f32).at[:A, :G].set(fp['Wih'][:, H:H + A].T)
  w_hh = jnp.zeros((KH, P), f32).at[:H, :G].set(fp['Whh'].T)
  w_out = jnp.zeros((KH, P), f32).at[:H, :Od].set(fp['Wout'].T)

  b_slab = jnp.zeros((8, 4 * P), f32)
  b_slab = b_slab.at[0, :H].set(fp['bse'])
  b_slab = b_slab.at[1, 0:A].set(fp['bq'] * inv_scale)
  b_slab = b_slab.at[1, P:P + A].set(fp['bk'])
  b_slab = b_slab.at[1, 2 * P:2 * P + A].set(fp['bv'])
  b_slab = b_slab.at[2, :G].set(fp['bhh'])
  b_slab = b_slab.at[3, :Od].set(fp['bout'])

  return dict(
      w_se=w_se.astype(bf16), w_fused=w_fused.astype(bf16),
      w_att=w_att.astype(bf16), w_hh=w_hh.astype(bf16), w_out=w_out.astype(bf16),
      b_slab=b_slab,
      Wrew_T=fp['Wrew'].T.astype(f32), brew=fp['brew'].astype(f32),
      bih=fp['bih'].astype(f32), wih_rew_T=fp['Wih'][:, H + A:].T.astype(f32),
      KD=KD, KH=KH, KA=KA, P=P)


# ----------------------------------------------------------------------------
# Pure-JAX reference (mirrors the PyTorch forward exactly)
# ----------------------------------------------------------------------------
def reference_forward(state, pre_rew, obs_mask, scenario_mask, pre_hidden, fp, cfg):
  bs, ne, _ = state.shape
  na, nh, e = cfg['n_agents'], cfg['n_heads'], cfg['head_dim']
  H, R, Od = cfg['hidden_dim'], cfg['rew_dim'], cfg['out_dim']
  A = nh * e

  embed = jax.nn.relu(state @ fp['Wse'].T + fp['bse'])
  q = embed @ fp['Wq'].T + fp['bq']
  k = embed @ fp['Wk'].T + fp['bk']
  v = jax.nn.relu(embed @ fp['Wv'].T + fp['bv'])
  qh = q.reshape(bs, ne, nh, e).transpose(0, 2, 1, 3)[:, :, :na]
  kh = k.reshape(bs, ne, nh, e).transpose(0, 2, 1, 3)
  vh = v.reshape(bs, ne, nh, e).transpose(0, 2, 1, 3)
  s = jnp.einsum('bhie,bhje->bhij', qh, kh) / np.sqrt(e)
  diag = jnp.pad(jnp.eye(na, dtype=bool), ((0, 0), (0, ne - na)))
  s = jnp.where(diag[None, None], -jnp.inf, s)
  om = obs_mask[:, :na, :].astype(bool)[:, None]
  s = jnp.where(om, -jnp.inf, s)
  w = jax.nn.softmax(s, axis=-1)
  w = jnp.where(jnp.isnan(w), 0.0, w)
  att = jnp.einsum('bhij,bhje->bhie', w, vh).transpose(0, 2, 1, 3).reshape(bs, na, A)
  rew_e = jax.nn.relu(pre_rew @ fp['Wrew'].T + fp['brew'])
  rew_b = jnp.broadcast_to(rew_e[:, None], (bs, na, R))
  x = jnp.concatenate([embed[:, :na], att, rew_b], -1).reshape(bs * na, -1)
  hprev = pre_hidden.reshape(bs * na, H)
  gx = x @ fp['Wih'].T + fp['bih']
  gh = hprev @ fp['Whh'].T + fp['bhh']
  r = jax.nn.sigmoid(gx[:, :H] + gh[:, :H])
  z = jax.nn.sigmoid(gx[:, H:2 * H] + gh[:, H:2 * H])
  n = jnp.tanh(gx[:, 2 * H:] + r * gh[:, 2 * H:])
  h = ((1 - z) * n + z * hprev).reshape(bs, na, H)
  am = scenario_mask[:, :na].astype(bool)[:, :, None]
  h = jnp.where(am, 0.0, h)
  pr = h @ fp['Wout'].T + fp['bout']
  pr = jnp.where(am, 0.0, pr)
  return pr, h


# ----------------------------------------------------------------------------
if __name__ == "__main__":
  cfg = dict(
      input_dim=16, n_agents=3, n_entities=5, n_actions=4,
      hidden_dim=32, n_heads=2, head_dim=16,            # atten_dim = 32
      rew_dim=32 // 8, task_rep_dim=8, use_ib=True)
  cfg['out_dim'] = cfg['task_rep_dim'] * 2 if cfg['use_ib'] else cfg['task_rep_dim']

  bs, ne, na, H = 2, cfg['n_entities'], cfg['n_agents'], cfg['hidden_dim']

  key = jax.random.PRNGKey(0)
  kp, kd = jax.random.split(key)
  full_params = init_full_params(kp, cfg)
  packed = pack_params(full_params, cfg)

  ks = jax.random.split(kd, 5)
  state = jax.random.normal(ks[0], (bs, ne, cfg['input_dim']), jnp.float32)
  pre_rew = jax.random.normal(ks[1], (bs, 1), jnp.float32)
  obs_mask = jax.random.bernoulli(ks[2], 0.2, (bs, ne, ne)).astype(jnp.float32)
  scenario_mask = jax.random.bernoulli(ks[3], 0.2, (bs, ne)).astype(jnp.float32)
  pre_hidden = jax.random.normal(ks[4], (bs, na, H), jnp.float32) * 0.1

  params_out, h_out = task_recurrent_encoder_forward(
      state, pre_rew, obs_mask, scenario_mask, pre_hidden, packed, cfg)
  params_out = jax.block_until_ready(params_out)
  h_out = jax.block_until_ready(h_out)

  ref_p, ref_h = reference_forward(
      state, pre_rew, obs_mask, scenario_mask, pre_hidden, full_params, cfg)

  # bf16 matmul operands (f32 accumulation) -> slightly looser tolerance.
  np.testing.assert_allclose(np.asarray(params_out), np.asarray(ref_p),
                             rtol=2e-2, atol=1e-2)
  np.testing.assert_allclose(np.asarray(h_out), np.asarray(ref_h),
                             rtol=2e-2, atol=1e-2)
  print("KERNEL_OK")
</pallas_src>

<mosaic_0001>
module attributes {stable_mosaic.version = 11 : i64} {
  func.func @task_recurrent_encoder_kernel(%arg0: i32, %arg1: memref<1x5x16xbf16, #tpu.memory_space<vmem>>, %arg2: memref<1x5x5xf32, #tpu.memory_space<vmem>>, %arg3: memref<1x5x1xf32, #tpu.memory_space<vmem>>, %arg4: memref<1x5x1xf32, #tpu.memory_space<vmem>>, %arg5: memref<1x1x128xf32, #tpu.memory_space<vmem>>, %arg6: memref<1x5x32xf32, #tpu.memory_space<vmem>>, %arg7: memref<16x128xbf16, #tpu.memory_space<vmem>>, %arg8: memref<128x512xbf16, #tpu.memory_space<vmem>>, %arg9: memref<32x128xbf16, #tpu.memory_space<vmem>>, %arg10: memref<32x128xbf16, #tpu.memory_space<vmem>>, %arg11: memref<32x128xbf16, #tpu.memory_space<vmem>>, %arg12: memref<8x512xf32, #tpu.memory_space<vmem>>, %arg13: memref<1x5x32xf32, #tpu.memory_space<vmem>>, %arg14: memref<1x5x128xf32, #tpu.memory_space<vmem>>) attributes {dimension_semantics = [#tpu.dimension_semantics<parallel>], iteration_bounds = array<i64: 2>, scalar_prefetch = 0 : i64, scratch_operands = 0 : i64, tpu.core_type = #tpu.core_type<tc>, window_params = [{transform_indices = @transform_0, window_bounds = array<i64: 1, 5, 16>}, {transform_indices = @transform_1, window_bounds = array<i64: 1, 5, 5>}, {transform_indices = @transform_2, window_bounds = array<i64: 1, 5, 1>}, {transform_indices = @transform_3, window_bounds = array<i64: 1, 5, 1>}, {transform_indices = @transform_4, window_bounds = array<i64: 1, 1, 128>}, {transform_indices = @transform_5, window_bounds = array<i64: 1, 5, 32>}, {pipeline_mode = #tpu.pipeline_mode<synchronous>, transform_indices = @transform_6, window_bounds = array<i64: 16, 128>}, {pipeline_mode = #tpu.pipeline_mode<synchronous>, transform_indices = @transform_7, window_bounds = array<i64: 128, 512>}, {pipeline_mode = #tpu.pipeline_mode<synchronous>, transform_indices = @transform_8, window_bounds = array<i64: 32, 128>}, {pipeline_mode = #tpu.pipeline_mode<synchronous>, transform_indices = @transform_9, window_bounds = array<i64: 32, 128>}, {pipeline_mode = #tpu.pipeline_mode<synchronous>, transform_indices = @transform_10, window_bounds = array<i64: 32, 128>}, {pipeline_mode = #tpu.pipeline_mode<synchronous>, transform_indices = @transform_11, window_bounds = array<i64: 8, 512>}, {transform_indices = @transform_12, window_bounds = array<i64: 1, 5, 32>}, {transform_indices = @transform_13, window_bounds = array<i64: 1, 5, 128>}]} {
    %c0 = arith.constant 0 : index
    %c0_0 = arith.constant 0 : index
    %c0_1 = arith.constant 0 : index
    %0 = vector.load %arg1[%c0, %c0_0, %c0_1] : memref<1x5x16xbf16, #tpu.memory_space<vmem>>, vector<1x5x16xbf16>
    %1 = vector.shape_cast %0 : vector<1x5x16xbf16> to vector<5x16xbf16>
    %c0_2 = arith.constant 0 : index
    %c0_3 = arith.constant 0 : index
    %c0_4 = arith.constant 0 : index
    %2 = vector.load %arg2[%c0_2, %c0_3, %c0_4] : memref<1x5x5xf32, #tpu.memory_space<vmem>>, vector<1x5x5xf32>
    %3 = vector.shape_cast %2 : vector<1x5x5xf32> to vector<5x5xf32>
    %c0_5 = arith.constant 0 : index
    %c0_6 = arith.constant 0 : index
    %c0_7 = arith.constant 0 : index
    %4 = vector.load %arg3[%c0_5, %c0_6, %c0_7] : memref<1x5x1xf32, #tpu.memory_space<vmem>>, vector<1x5x1xf32>
    %5 = vector.shape_cast %4 : vector<1x5x1xf32> to vector<5x1xf32>
    %c0_8 = arith.constant 0 : index
    %c0_9 = arith.constant 0 : index
    %c0_10 = arith.constant 0 : index
    %6 = vector.load %arg4[%c0_8, %c0_9, %c0_10] : memref<1x5x1xf32, #tpu.memory_space<vmem>>, vector<1x5x1xf32>
    %7 = vector.shape_cast %6 : vector<1x5x1xf32> to vector<5x1xf32>
    %c0_11 = arith.constant 0 : index
    %c0_12 = arith.constant 0 : index
    %c0_13 = arith.constant 0 : index
    %8 = vector.load %arg5[%c0_11, %c0_12, %c0_13] : memref<1x1x128xf32, #tpu.memory_space<vmem>>, vector<1x1x128xf32>
    %9 = vector.shape_cast %8 : vector<1x1x128xf32> to vector<1x128xf32>
    %c0_14 = arith.constant 0 : index
    %c0_15 = arith.constant 0 : index
    %c0_16 = arith.constant 0 : index
    %10 = vector.load %arg6[%c0_14, %c0_15, %c0_16] : memref<1x5x32xf32, #tpu.memory_space<vmem>>, vector<1x5x32xf32>
    %11 = vector.shape_cast %10 : vector<1x5x32xf32> to vector<5x32xf32>
    %c0_17 = arith.constant 0 : index
    %c0_18 = arith.constant 0 : index
    %12 = vector.load %arg12[%c0_17, %c0_18] : memref<8x512xf32, #tpu.memory_space<vmem>>, vector<8x512xf32>
    %c0_19 = arith.constant 0 : index
    %c0_20 = arith.constant 0 : index
    %13 = vector.load %arg7[%c0_19, %c0_20] : memref<16x128xbf16, #tpu.memory_space<vmem>>, vector<16x128xbf16>
    %cst = arith.constant dense<0.000000e+00> : vector<5x128xf32>
    %14 = tpu.matmul %1, %13, %cst {dimension_numbers = #tpu.dot_dimension_numbers<[1], [0], [0], [1], [0, 0, 1, 1], [], []>} : vector<5x16xbf16>, vector<16x128xbf16>, vector<5x128xf32> -> vector<5x128xf32>
    %15 = vector.extract_strided_slice %12 {offsets = [0, 0], sizes = [1, 128], strides = [1, 1]} : vector<8x512xf32> to vector<1x128xf32>
    %16 = vector.broadcast %15 : vector<1x128xf32> to vector<5x128xf32>
    %17 = arith.addf %14, %16 : vector<5x128xf32>
    %cst_21 = arith.constant 0.000000e+00 : f32
    %18 = vector.broadcast %cst_21 : f32 to vector<5x128xf32>
    %19 = arith.maximumf %17, %18 : vector<5x128xf32>
    %20 = arith.truncf %19 : vector<5x128xf32> to vector<5x128xbf16>
    %c0_22 = arith.constant 0 : index
    %c0_23 = arith.constant 0 : index
    %21 = vector.load %arg8[%c0_22, %c0_23] : memref<128x512xbf16, #tpu.memory_space<vmem>>, vector<128x512xbf16>
    %cst_24 = arith.constant dense<0.000000e+00> : vector<5x512xf32>
    %22 = tpu.matmul %20, %21, %cst_24 {dimension_numbers = #tpu.dot_dimension_numbers<[1], [0], [0], [1], [0, 0, 1, 1], [], []>} : vector<5x128xbf16>, vector<128x512xbf16>, vector<5x512xf32> -> vector<5x512xf32>
    %23 = vector.extract_strided_slice %12 {offsets = [1, 0], sizes = [1, 512], strides = [1, 1]} : vector<8x512xf32> to vector<1x512xf32>
    %24 = vector.broadcast %23 : vector<1x512xf32> to vector<5x512xf32>
    %25 = arith.addf %22, %24 : vector<5x512xf32>
    %26 = vector.extract_strided_slice %25 {offsets = [0, 256], sizes = [5, 128], strides = [1, 1]} : vector<5x512xf32> to vector<5x128xf32>
    %cst_25 = arith.constant 0.000000e+00 : f32
    %27 = vector.broadcast %cst_25 : f32 to vector<5x128xf32>
    %28 = arith.maximumf %26, %27 : vector<5x128xf32>
    %29 = vector.extract_strided_slice %25 {offsets = [0, 0], sizes = [5, 16], strides = [1, 1]} : vector<5x512xf32> to vector<5x16xf32>
    %30 = vector.extract_strided_slice %25 {offsets = [0, 128], sizes = [5, 16], strides = [1, 1]} : vector<5x512xf32> to vector<5x16xf32>
    %31 = vector.extract_strided_slice %28 {offsets = [0, 0], sizes = [5, 16], strides = [1, 1]} : vector<5x128xf32> to vector<5x16xf32>
    %cst_26 = arith.constant dense<0.000000e+00> : vector<5x5xf32>
    %32 = tpu.matmul %29, %30, %cst_26 {dimension_numbers = #tpu.dot_dimension_numbers<[1], [1], [0], [0], [0, 0, 1, 0], [], []>} : vector<5x16xf32>, vector<5x16xf32>, vector<5x5xf32> -> vector<5x5xf32>
    %33 = arith.addf %32, %3 : vector<5x5xf32>
    %cst_27 = arith.constant dense<0xFF800000> : vector<5xf32>
    %34 = vector.multi_reduction <maximumf>, %33, %cst_27 [1] : vector<5x5xf32> to vector<5xf32>
    %35 = vector.shape_cast %34 : vector<5xf32> to vector<5x1xf32>
    %36 = vector.broadcast %35 : vector<5x1xf32> to vector<5x5xf32>
    %37 = arith.subf %33, %36 : vector<5x5xf32>
    %38 = math.exp %37 : vector<5x5xf32>
    %cst_28 = arith.constant dense<0.000000e+00> : vector<5xf32>
    %39 = vector.multi_reduction <add>, %38, %cst_28 [1] : vector<5x5xf32> to vector<5xf32>
    %40 = vector.shape_cast %39 : vector<5xf32> to vector<5x1xf32>
    %41 = tpu.reciprocal %40 {approx = true} : vector<5x1xf32> -> vector<5x1xf32>
    %42 = vector.broadcast %41 : vector<5x1xf32> to vector<5x5xf32>
    %43 = arith.mulf %38, %42 : vector<5x5xf32>
    %cst_29 = arith.constant dense<0.000000e+00> : vector<5x16xf32>
    %44 = tpu.matmul %43, %31, %cst_29 {dimension_numbers = #tpu.dot_dimension_numbers<[1], [0], [0], [1], [0, 0, 1, 1], [], []>} : vector<5x5xf32>, vector<5x16xf32>, vector<5x16xf32> -> vector<5x16xf32>
    %45 = vector.extract_strided_slice %25 {offsets = [0, 16], sizes = [5, 16], strides = [1, 1]} : vector<5x512xf32> to vector<5x16xf32>
    %46 = vector.extract_strided_slice %25 {offsets = [0, 144], sizes = [5, 16], strides = [1, 1]} : vector<5x512xf32> to vector<5x16xf32>
    %47 = vector.extract_strided_slice %28 {offsets = [0, 16], sizes = [5, 16], strides = [1, 1]} : vector<5x128xf32> to vector<5x16xf32>
    %cst_30 = arith.constant dense<0.000000e+00> : vector<5x5xf32>
    %48 = tpu.matmul %45, %46, %cst_30 {dimension_numbers = #tpu.dot_dimension_numbers<[1], [1], [0], [0], [0, 0, 1, 0], [], []>} : vector<5x16xf32>, vector<5x16xf32>, vector<5x5xf32> -> vector<5x5xf32>
    %49 = arith.addf %48, %3 : vector<5x5xf32>
    %cst_31 = arith.constant dense<0xFF800000> : vector<5xf32>
    %50 = vector.multi_reduction <maximumf>, %49, %cst_31 [1] : vector<5x5xf32> to vector<5xf32>
    %51 = vector.shape_cast %50 : vector<5xf32> to vector<5x1xf32>
    %52 = vector.broadcast %51 : vector<5x1xf32> to vector<5x5xf32>
    %53 = arith.subf %49, %52 : vector<5x5xf32>
    %54 = math.exp %53 : vector<5x5xf32>
    %cst_32 = arith.constant dense<0.000000e+00> : vector<5xf32>
    %55 = vector.multi_reduction <add>, %54, %cst_32 [1] : vector<5x5xf32> to vector<5xf32>
    %56 = vector.shape_cast %55 : vector<5xf32> to vector<5x1xf32>
    %57 = tpu.reciprocal %56 {approx = true} : vector<5x1xf32> -> vector<5x1xf32>
    %58 = vector.broadcast %57 : vector<5x1xf32> to vector<5x5xf32>
    %59 = arith.mulf %54, %58 : vector<5x5xf32>
    %cst_33 = arith.constant dense<0.000000e+00> : vector<5x16xf32>
    %60 = tpu.matmul %59, %47, %cst_33 {dimension_numbers = #tpu.dot_dimension_numbers<[1], [0], [0], [1], [0, 0, 1, 1], [], []>} : vector<5x5xf32>, vector<5x16xf32>, vector<5x16xf32> -> vector<5x16xf32>
    %61 = tpu.concatenate %44, %60 in 1 : vector<5x16xf32>, vector<5x16xf32> -> vector<5x32xf32>
    %62 = vector.broadcast %5 : vector<5x1xf32> to vector<5x32xf32>
    %63 = arith.mulf %61, %62 : vector<5x32xf32>
    %64 = vector.extract_strided_slice %25 {offsets = [0, 384], sizes = [5, 128], strides = [1, 1]} : vector<5x512xf32> to vector<5x128xf32>
    %65 = vector.broadcast %9 : vector<1x128xf32> to vector<5x128xf32>
    %66 = arith.addf %64, %65 : vector<5x128xf32>
    %67 = arith.truncf %63 : vector<5x32xf32> to vector<5x32xbf16>
    %c0_34 = arith.constant 0 : index
    %c0_35 = arith.constant 0 : index
    %68 = vector.load %arg9[%c0_34, %c0_35] : memref<32x128xbf16, #tpu.memory_space<vmem>>, vector<32x128xbf16>
    %cst_36 = arith.constant dense<0.000000e+00> : vector<5x128xf32>
    %69 = tpu.matmul %67, %68, %cst_36 {dimension_numbers = #tpu.dot_dimension_numbers<[1], [0], [0], [1], [0, 0, 1, 1], [], []>} : vector<5x32xbf16>, vector<32x128xbf16>, vector<5x128xf32> -> vector<5x128xf32>
    %70 = arith.addf %66, %69 : vector<5x128xf32>
    %71 = arith.truncf %11 : vector<5x32xf32> to vector<5x32xbf16>
    %c0_37 = arith.constant 0 : index
    %c0_38 = arith.constant 0 : index
    %72 = vector.load %arg10[%c0_37, %c0_38] : memref<32x128xbf16, #tpu.memory_space<vmem>>, vector<32x128xbf16>
    %cst_39 = arith.constant dense<0.000000e+00> : vector<5x128xf32>
    %73 = tpu.matmul %71, %72, %cst_39 {dimension_numbers = #tpu.dot_dimension_numbers<[1], [0], [0], [1], [0, 0, 1, 1], [], []>} : vector<5x32xbf16>, vector<32x128xbf16>, vector<5x128xf32> -> vector<5x128xf32>
    %74 = vector.extract_strided_slice %12 {offsets = [2, 0], sizes = [1, 128], strides = [1, 1]} : vector<8x512xf32> to vector<1x128xf32>
    %75 = vector.broadcast %74 : vector<1x128xf32> to vector<5x128xf32>
    %76 = arith.addf %73, %75 : vector<5x128xf32>
    %77 = vector.extract_strided_slice %70 {offsets = [0, 0], sizes = [5, 32], strides = [1, 1]} : vector<5x128xf32> to vector<5x32xf32>
    %78 = vector.extract_strided_slice %76 {offsets = [0, 0], sizes = [5, 32], strides = [1, 1]} : vector<5x128xf32> to vector<5x32xf32>
    %79 = arith.addf %77, %78 : vector<5x32xf32>
    %80 = arith.negf %79 : vector<5x32xf32>
    %81 = math.exp %80 : vector<5x32xf32>
    %cst_40 = arith.constant 1.000000e+00 : f32
    %82 = vector.broadcast %cst_40 : f32 to vector<5x32xf32>
    %83 = arith.addf %82, %81 : vector<5x32xf32>
    %84 = arith.divf %82, %83 : vector<5x32xf32>
    %85 = vector.extract_strided_slice %70 {offsets = [0, 32], sizes = [5, 32], strides = [1, 1]} : vector<5x128xf32> to vector<5x32xf32>
    %86 = vector.extract_strided_slice %76 {offsets = [0, 32], sizes = [5, 32], strides = [1, 1]} : vector<5x128xf32> to vector<5x32xf32>
    %87 = arith.addf %85, %86 : vector<5x32xf32>
    %88 = arith.negf %87 : vector<5x32xf32>
    %89 = math.exp %88 : vector<5x32xf32>
    %cst_41 = arith.constant 1.000000e+00 : f32
    %90 = vector.broadcast %cst_41 : f32 to vector<5x32xf32>
    %91 = arith.addf %90, %89 : vector<5x32xf32>
    %92 = arith.divf %90, %91 : vector<5x32xf32>
    %93 = vector.extract_strided_slice %70 {offsets = [0, 64], sizes = [5, 32], strides = [1, 1]} : vector<5x128xf32> to vector<5x32xf32>
    %94 = vector.extract_strided_slice %76 {offsets = [0, 64], sizes = [5, 32], strides = [1, 1]} : vector<5x128xf32> to vector<5x32xf32>
    %95 = arith.mulf %84, %94 : vector<5x32xf32>
    %96 = arith.addf %93, %95 : vector<5x32xf32>
    %97 = math.tanh %96 : vector<5x32xf32>
    %cst_42 = arith.constant 1.000000e+00 : f32
    %98 = vector.broadcast %cst_42 : f32 to vector<5x32xf32>
    %99 = arith.subf %98, %92 : vector<5x32xf32>
    %100 = arith.mulf %99, %97 : vector<5x32xf32>
    %101 = arith.mulf %92, %11 : vector<5x32xf32>
    %102 = arith.addf %100, %101 : vector<5x32xf32>
    %103 = vector.broadcast %7 : vector<5x1xf32> to vector<5x32xf32>
    %104 = arith.mulf %102, %103 : vector<5x32xf32>
    %c0_43 = arith.constant 0 : index
    %c0_44 = arith.constant 0 : index
    %c0_45 = arith.constant 0 : index
    %105 = vector.load %arg13[%c0_43, %c0_44, %c0_45] : memref<1x5x32xf32, #tpu.memory_space<vmem>>, vector<1x5x32xf32>
    %106 = vector.shape_cast %105 : vector<1x5x32xf32> to vector<5x32xf32>
    %107 = vector.shape_cast %104 : vector<5x32xf32> to vector<1x5x32xf32>
    tpu.vector_store %arg13[%c0_43, %c0_44, %c0_45], %107 {strides = array<i32>} : memref<1x5x32xf32, #tpu.memory_space<vmem>>, vector<1x5x32xf32>,
    %108 = arith.truncf %104 : vector<5x32xf32> to vector<5x32xbf16>
    %c0_46 = arith.constant 0 : index
    %c0_47 = arith.constant 0 : index
    %109 = vector.load %arg11[%c0_46, %c0_47] : memref<32x128xbf16, #tpu.memory_space<vmem>>, vector<32x128xbf16>
    %cst_48 = arith.constant dense<0.000000e+00> : vector<5x128xf32>
    %110 = tpu.matmul %108, %109, %cst_48 {dimension_numbers = #tpu.dot_dimension_numbers<[1], [0], [0], [1], [0, 0, 1, 1], [], []>} : vector<5x32xbf16>, vector<32x128xbf16>, vector<5x128xf32> -> vector<5x128xf32>
    %111 = vector.extract_strided_slice %12 {offsets = [3, 0], sizes = [1, 128], strides = [1, 1]} : vector<8x512xf32> to vector<1x128xf32>
    %112 = vector.broadcast %111 : vector<1x128xf32> to vector<5x128xf32>
    %113 = arith.addf %110, %112 : vector<5x128xf32>
    %114 = vector.broadcast %7 : vector<5x1xf32> to vector<5x128xf32>
    %115 = arith.mulf %113, %114 : vector<5x128xf32>
    %c0_49 = arith.constant 0 : index
    %c0_50 = arith.constant 0 : index
    %c0_51 = arith.constant 0 : index
    %116 = vector.load %arg14[%c0_49, %c0_50, %c0_51] : memref<1x5x128xf32, #tpu.memory_space<vmem>>, vector<1x5x128xf32>
    %117 = vector.shape_cast %116 : vector<1x5x128xf32> to vector<5x128xf32>
    %118 = vector.shape_cast %115 : vector<5x128xf32> to vector<1x5x128xf32>
    tpu.vector_store %arg14[%c0_49, %c0_50, %c0_51], %118 {strides = array<i32>} : memref<1x5x128xf32, #tpu.memory_space<vmem>>, vector<1x5x128xf32>,
    return
  }
  func.func @transform_0(%arg0: i32) -> (i32, i32, i32) {
    %c0_i32 = arith.constant 0 : i32
    %c0_i32_0 = arith.constant 0 : i32
    %c0_i32_1 = arith.constant 0 : i32
    return %arg0, %c0_i32, %c0_i32_0 : i32, i32, i32
  }
  func.func @transform_1(%arg0: i32) -> (i32, i32, i32) {
    %c0_i32 = arith.constant 0 : i32
    %c0_i32_0 = arith.constant 0 : i32
    %c0_i32_1 = arith.constant 0 : i32
    return %arg0, %c0_i32, %c0_i32_0 : i32, i32, i32
  }
  func.func @transform_2(%arg0: i32) -> (i32, i32, i32) {
    %c0_i32 = arith.constant 0 : i32
    %c0_i32_0 = arith.constant 0 : i32
    %c0_i32_1 = arith.constant 0 : i32
    return %arg0, %c0_i32, %c0_i32_0 : i32, i32, i32
  }
  func.func @transform_3(%arg0: i32) -> (i32, i32, i32) {
    %c0_i32 = arith.constant 0 : i32
    %c0_i32_0 = arith.constant 0 : i32
    %c0_i32_1 = arith.constant 0 : i32
    return %arg0, %c0_i32, %c0_i32_0 : i32, i32, i32
  }
  func.func @transform_4(%arg0: i32) -> (i32, i32, i32) {
    %c0_i32 = arith.constant 0 : i32
    %c0_i32_0 = arith.constant 0 : i32
    %c0_i32_1 = arith.constant 0 : i32
    return %arg0, %c0_i32, %c0_i32_0 : i32, i32, i32
  }
  func.func @transform_5(%arg0: i32) -> (i32, i32, i32) {
    %c0_i32 = arith.constant 0 : i32
    %c0_i32_0 = arith.constant 0 : i32
    %c0_i32_1 = arith.constant 0 : i32
    return %arg0, %c0_i32, %c0_i32_0 : i32, i32, i32
  }
  func.func @transform_6(%arg0: i32) -> (i32, i32) {
    %c0_i32 = arith.constant 0 : i32
    %c0_i32_0 = arith.constant 0 : i32
    %c0_i32_1 = arith.constant 0 : i32
    return %c0_i32, %c0_i32_0 : i32, i32
  }
  func.func @transform_7(%arg0: i32) -> (i32, i32) {
    %c0_i32 = arith.constant 0 : i32
    %c0_i32_0 = arith.constant 0 : i32
    %c0_i32_1 = arith.constant 0 : i32
    return %c0_i32, %c0_i32_0 : i32, i32
  }
  func.func @transform_8(%arg0: i32) -> (i32, i32) {
    %c0_i32 = arith.constant 0 : i32
    %c0_i32_0 = arith.constant 0 : i32
    %c0_i32_1 = arith.constant 0 : i32
    return %c0_i32, %c0_i32_0 : i32, i32
  }
  func.func @transform_9(%arg0: i32) -> (i32, i32) {
    %c0_i32 = arith.constant 0 : i32
    %c0_i32_0 = arith.constant 0 : i32
    %c0_i32_1 = arith.constant 0 : i32
    return %c0_i32, %c0_i32_0 : i32, i32
  }
  func.func @transform_10(%arg0: i32) -> (i32, i32) {
    %c0_i32 = arith.constant 0 : i32
    %c0_i32_0 = arith.constant 0 : i32
    %c0_i32_1 = arith.constant 0 : i32
    return %c0_i32, %c0_i32_0 : i32, i32
  }
  func.func @transform_11(%arg0: i32) -> (i32, i32) {
    %c0_i32 = arith.constant 0 : i32
    %c0_i32_0 = arith.constant 0 : i32
    %c0_i32_1 = arith.constant 0 : i32
    return %c0_i32, %c0_i32_0 : i32, i32
  }
  func.func @transform_12(%arg0: i32) -> (i32, i32, i32) {
    %c0_i32 = arith.constant 0 : i32
    %c0_i32_0 = arith.constant 0 : i32
    %c0_i32_1 = arith.constant 0 : i32
    return %arg0, %c0_i32, %c0_i32_0 : i32, i32, i32
  }
  func.func @transform_13(%arg0: i32) -> (i32, i32, i32) {
    %c0_i32 = arith.constant 0 : i32
    %c0_i32_0 = arith.constant 0 : i32
    %c0_i32_1 = arith.constant 0 : i32
    return %arg0, %c0_i32, %c0_i32_0 : i32, i32, i32
  }
}

</mosaic_0001>

<llo_original>
// kernel: tpu_custom_call.1
$region0: #{tpu_custom_call.1}
  #allocation0 [shape = 'u32[]', space=smem, size = 0x4, offset = 0x4, fixed_abs, tag = 'smem constant byte address 0x4 - core index']
  #allocation1 [shape = 'u32[144,128]{1,0:T(1,128)}', space=vmem, size = 0x12000, scoped, tag = 'internal scratch']
  %s0 = inlined_call_operand.vmem [shape: bf16[2,5,16], index: 0, kind: input, shape index: {}]
  %s1 = inlined_call_operand.vmem [shape: f32[2,5,5], index: 1, kind: input, shape index: {}]
  %s2 = inlined_call_operand.vmem [shape: f32[2,5,1], index: 2, kind: input, shape index: {}]
  %s3 = inlined_call_operand.vmem [shape: f32[2,5,1], index: 3, kind: input, shape index: {}]
  %s4 = inlined_call_operand.vmem [shape: f32[2,1,128], index: 4, kind: input, shape index: {}]
  %s5 = inlined_call_operand.vmem [shape: f32[2,5,32], index: 5, kind: input, shape index: {}]
  %s6 = inlined_call_operand.vmem [shape: bf16[16,128], index: 6, kind: input, shape index: {}]
  %s7 = inlined_call_operand.hbm [shape: bf16[128,512], index: 7, kind: input, shape index: {}]
  %s8 = inlined_call_operand.vmem [shape: bf16[32,128], index: 8, kind: input, shape index: {}]
  %s9 = inlined_call_operand.vmem [shape: bf16[32,128], index: 9, kind: input, shape index: {}]
  %s10 = inlined_call_operand.vmem [shape: bf16[32,128], index: 10, kind: input, shape index: {}]
  %s11 = inlined_call_operand.vmem [shape: f32[8,512], index: 11, kind: input, shape index: {}]
  %s12 = inlined_call_operand.vmem [shape: f32[2,5,32], index: 12, kind: output, shape index: {0}]
  %s13 = inlined_call_operand.vmem [shape: f32[2,5,128], index: 13, kind: output, shape index: {1}]
  %14 = xla_tuple %s12, %s13
  %s15 = sld [smem:[#allocation0]]
  $region93: #{tpu_custom_call.1} parent=0
    _
  %s17 = ssub.s32 1, %s15
  %s18 = scalar_select 0, %s17, %s15
  $region1: #{tpu_custom_call.1} parent=0
    #allocation2 [shape = 'u8[131072]{0}', space=vmem, size = 0x20000, scoped, tag = 'input window, operand 7, single buffered']
    #allocation3 [shape = 's32[2]{0}', space=sflag, size = 0x8, scoped, tag = 'scoped memory for tpu_custom_call.1']
    %19 = vsyncpa [#allocation3], 0
    loop: start=0, step=1, limit=4
    $region2: #{tpu_custom_call.1} parent=1 // loop_pre_header
      _
    $region3: #{tpu_custom_call.1} parent=1 // loop_header
      %s21 = sphi 0, %s25
      %p22 = scmp.ge.s32.totalorder %s21, 4
      %s31 = sphi 0, %s33
      %s34 = sphi 0, %s31
      %s35 = sphi 0, %s34
      %s51 = sphi 0, %s35
      %s57 = sphi 0, %s59
      %s60 = sphi 0, %s57
      %s61 = sphi 0, %s60
      %s77 = sphi 0, %s61
      %s83 = sphi 0, %s85
      %s86 = sphi 0, %s83
      %s87 = sphi 0, %s86
      %s103 = sphi 0, %s87
      %s109 = sphi 0, %s111
      %s112 = sphi 0, %s109
      %s113 = sphi 0, %s112
      %s129 = sphi 0, %s113
      %s135 = sphi 0, %s137
      %s138 = sphi 0, %s135
      %s139 = sphi 0, %s138
      %s155 = sphi 0, %s139
      %s161 = sphi 0, %s163
      %s164 = sphi 0, %s161
      %s165 = sphi 0, %s164
      %s181 = sphi 0, %s165
      %s185 = sphi 0, %s185
      %s187 = sphi 0, %s185
      %s188 = sphi 0, %s187
      %s202 = sphi 0, %s188
      %s206 = sphi 0, %s206
      %s208 = sphi 0, %s206
      %s209 = sphi 0, %s208
      %s223 = sphi 0, %s209
      %s227 = sphi 0, %s227
      %s229 = sphi 0, %s227
      %s230 = sphi 0, %s229
      %s244 = sphi 0, %s230
      %s248 = sphi 0, %s248
      %s250 = sphi 0, %s248
      %s251 = sphi 0, %s250
      %s265 = sphi 0, %s251
      %s269 = sphi 0, %s269
      %s271 = sphi 0, %s269
      %s272 = sphi 0, %s271
      %s286 = sphi 0, %s272
      %s290 = sphi 0, %s290
      %s292 = sphi 0, %s290
      %s293 = sphi 0, %s292
      %s307 = sphi 0, %s293
      %s313 = sphi 0, %s315
      %s316 = sphi 0, %s313
      %s317 = sphi 0, %s316
      %s333 = sphi 0, %s317
      %s339 = sphi 0, %s341
      %s342 = sphi 0, %s339
      %s343 = sphi 0, %s342
      %s359 = sphi 0, %s343
    $region4: #{tpu_custom_call.1} parent=1 // loop_header_branch
      %24 = sbr.rel (%p22) target = $region8
    $region5: #{tpu_custom_call.1} parent=1 // loop_body
      %s26 = ssub.s32 %s21, 1
      %s27 = ssub.s32 %s21, 2
      %s28 = sadd.s32 %s21, 1
      %s29 = ssub.s32 %s21, %s28
      %p30 = scmp.eq.s32.totalorder %s29, 0
      %s32 = sadd.s32 %s31, 1
      %s33 = scalar_select %p30, %s31, %s32
      %p36 = pneg %p30
      %p37 = scmp.eq.s32.totalorder %s21, 1
      %p38 = por %p36, %p37
      %p39 = scmp.ne.s32.totalorder %s31, %s34
      %p40 = scmp.eq.s32.totalorder %s21, 0
      %p41 = por %p39, %p40
      %p42 = scmp.ne.s32.totalorder %s31, %s34
      %p43 = scmp.eq.s32.totalorder %s26, 1
      %p44 = por %p42, %p43
      %p45 = scmp.ne.s32.totalorder %s34, %s35
      %p46 = scmp.eq.s32.totalorder %s26, 0
      %p47 = por %p45, %p46
      %p48 = scmp.ne.s32.totalorder %s34, %s35
      %p49 = scmp.eq.s32.totalorder %s27, 1
      %p50 = por %p48, %p49
      %p52 = scmp.ne.s32.totalorder %s35, %s51
      %p53 = scmp.eq.s32.totalorder %s27, 0
      %p54 = por %p52, %p53
      %s55 = ssub.s32 %s21, %s28
      %p56 = scmp.eq.s32.totalorder %s55, 0
      %s58 = sadd.s32 %s57, 1
      %s59 = scalar_select %p56, %s57, %s58
      %p62 = pneg %p56
      %p63 = scmp.eq.s32.totalorder %s21, 1
      %p64 = por %p62, %p63
      %p65 = scmp.ne.s32.totalorder %s57, %s60
      %p66 = scmp.eq.s32.totalorder %s21, 0
      %p67 = por %p65, %p66
      %p68 = scmp.ne.s32.totalorder %s57, %s60
      %p69 = scmp.eq.s32.totalorder %s26, 1
      %p70 = por %p68, %p69
      %p71 = scmp.ne.s32.totalorder %s60, %s61
      %p72 = scmp.eq.s32.totalorder %s26, 0
      %p73 = por %p71, %p72
      %p74 = scmp.ne.s32.totalorder %s60, %s61
      %p75 = scmp.eq.s32.totalorder %s27, 1
      %p76 = por %p74, %p75
      %p78 = scmp.ne.s32.totalorder %s61, %s77
      %p79 = scmp.eq.s32.totalorder %s27, 0
      %p80 = por %p78, %p79
      %s81 = ssub.s32 %s21, %s28
      %p82 = scmp.eq.s32.totalorder %s81, 0
      %s84 = sadd.s32 %s83, 1
      %s85 = scalar_select %p82, %s83, %s84
      %p88 = pneg %p82
      %p89 = scmp.eq.s32.totalorder %s21, 1
      %p90 = por %p88, %p89
      %p91 = scmp.ne.s32.totalorder %s83, %s86
      %p92 = scmp.eq.s32.totalorder %s21, 0
      %p93 = por %p91, %p92
      %p94 = scmp.ne.s32.totalorder %s83, %s86
      %p95 = scmp.eq.s32.totalorder %s26, 1
      %p96 = por %p94, %p95
      %p97 = scmp.ne.s32.totalorder %s86, %s87
      %p98 = scmp.eq.s32.totalorder %s26, 0
      %p99 = por %p97, %p98
      %p100 = scmp.ne.s32.totalorder %s86, %s87
      %p101 = scmp.eq.s32.totalorder %s27, 1
      %p102 = por %p100, %p101
      %p104 = scmp.ne.s32.totalorder %s87, %s103
      %p105 = scmp.eq.s32.totalorder %s27, 0
      %p106 = por %p104, %p105
      %s107 = ssub.s32 %s21, %s28
      %p108 = scmp.eq.s32.totalorder %s107, 0
      %s110 = sadd.s32 %s109, 1
      %s111 = scalar_select %p108, %s109, %s110
      %p114 = pneg %p108
      %p115 = scmp.eq.s32.totalorder %s21, 1
      %p116 = por %p114, %p115
      %p117 = scmp.ne.s32.totalorder %s109, %s112
      %p118 = scmp.eq.s32.totalorder %s21, 0
      %p119 = por %p117, %p118
      %p120 = scmp.ne.s32.totalorder %s109, %s112
      %p121 = scmp.eq.s32.totalorder %s26, 1
      %p122 = por %p120, %p121
      %p123 = scmp.ne.s32.totalorder %s112, %s113
      %p124 = scmp.eq.s32.totalorder %s26, 0
      %p125 = por %p123, %p124
      %p126 = scmp.ne.s32.totalorder %s112, %s113
      %p127 = scmp.eq.s32.totalorder %s27, 1
      %p128 = por %p126, %p127
      %p130 = scmp.ne.s32.totalorder %s113, %s129
      %p131 = scmp.eq.s32.totalorder %s27, 0
      %p132 = por %p130, %p131
      %s133 = ssub.s32 %s21, %s28
      %p134 = scmp.eq.s32.totalorder %s133, 0
      %s136 = sadd.s32 %s135, 1
      %s137 = scalar_select %p134, %s135, %s136
      %p140 = pneg %p134
      %p141 = scmp.eq.s32.totalorder %s21, 1
      %p142 = por %p140, %p141
      %p143 = scmp.ne.s32.totalorder %s135, %s138
      %p144 = scmp.eq.s32.totalorder %s21, 0
      %p145 = por %p143, %p144
      %p146 = scmp.ne.s32.totalorder %s135, %s138
      %p147 = scmp.eq.s32.totalorder %s26, 1
      %p148 = por %p146, %p147
      %p149 = scmp.ne.s32.totalorder %s138, %s139
      %p150 = scmp.eq.s32.totalorder %s26, 0
      %p151 = por %p149, %p150
      %p152 = scmp.ne.s32.totalorder %s138, %s139
      %p153 = scmp.eq.s32.totalorder %s27, 1
      %p154 = por %p152, %p153
      %p156 = scmp.ne.s32.totalorder %s139, %s155
      %p157 = scmp.eq.s32.totalorder %s27, 0
      %p158 = por %p156, %p157
      %s159 = ssub.s32 %s21, %s28
      %p160 = scmp.eq.s32.totalorder %s159, 0
      %s162 = sadd.s32 %s161, 1
      %s163 = scalar_select %p160, %s161, %s162
      %p166 = pneg %p160
      %p167 = scmp.eq.s32.totalorder %s21, 1
      %p168 = por %p166, %p167
      %p169 = scmp.ne.s32.totalorder %s161, %s164
      %p170 = scmp.eq.s32.totalorder %s21, 0
      %p171 = por %p169, %p170
      %p172 = scmp.ne.s32.totalorder %s161, %s164
      %p173 = scmp.eq.s32.totalorder %s26, 1
      %p174 = por %p172, %p173
      %p175 = scmp.ne.s32.totalorder %s164, %s165
      %p176 = scmp.eq.s32.totalorder %s26, 0
      %p177 = por %p175, %p176
      %p178 = scmp.ne.s32.totalorder %s164, %s165
      %p179 = scmp.eq.s32.totalorder %s27, 1
      %p180 = por %p178, %p179
      %p182 = scmp.ne.s32.totalorder %s165, %s181
      %p183 = scmp.eq.s32.totalorder %s27, 0
      %p184 = por %p182, %p183
      %s186 = sadd.s32 %s185, 1
      %p189 = scmp.eq.s32.totalorder %s21, 1
      %p190 = scmp.ne.s32.totalorder %s185, %s187
      %p191 = scmp.eq.s32.totalorder %s21, 0
      %p192 = por %p190, %p191
      %p193 = scmp.ne.s32.totalorder %s185, %s187
      %p194 = scmp.eq.s32.totalorder %s26, 1
      %p195 = por %p193, %p194
      %p196 = scmp.ne.s32.totalorder %s187, %s188
      %p197 = scmp.eq.s32.totalorder %s26, 0
      %p198 = por %p196, %p197
      %p199 = scmp.ne.s32.totalorder %s187, %s188
      %p200 = scmp.eq.s32.totalorder %s27, 1
      %p201 = por %p199, %p200
      %p203 = scmp.ne.s32.totalorder %s188, %s202
      %p204 = scmp.eq.s32.totalorder %s27, 0
      %p205 = por %p203, %p204
      %s207 = sadd.s32 %s206, 1
      %p210 = scmp.eq.s32.totalorder %s21, 1
      %p211 = scmp.ne.s32.totalorder %s206, %s208
      %p212 = scmp.eq.s32.totalorder %s21, 0
      %p213 = por %p211, %p212
      %p214 = scmp.ne.s32.totalorder %s206, %s208
      %p215 = scmp.eq.s32.totalorder %s26, 1
      %p216 = por %p214, %p215
      %p217 = scmp.ne.s32.totalorder %s208, %s209
      %p218 = scmp.eq.s32.totalorder %s26, 0
      %p219 = por %p217, %p218
      %p220 = scmp.ne.s32.totalorder %s208, %s209
      %p221 = scmp.eq.s32.totalorder %s27, 1
      %p222 = por %p220, %p221
      %p224 = scmp.ne.s32.totalorder %s209, %s223
      %p225 = scmp.eq.s32.totalorder %s27, 0
      %p226 = por %p224, %p225
      %s228 = sadd.s32 %s227, 1
      %p231 = scmp.eq.s32.totalorder %s21, 1
      %p232 = scmp.ne.s32.totalorder %s227, %s229
      %p233 = scmp.eq.s32.totalorder %s21, 0
      %p234 = por %p232, %p233
      %p235 = scmp.ne.s32.totalorder %s227, %s229
      %p236 = scmp.eq.s32.totalorder %s26, 1
      %p237 = por %p235, %p236
      %p238 = scmp.ne.s32.totalorder %s229, %s230
      %p239 = scmp.eq.s32.totalorder %s26, 0
      %p240 = por %p238, %p239
      %p241 = scmp.ne.s32.totalorder %s229, %s230
      %p242 = scmp.eq.s32.totalorder %s27, 1
      %p243 = por %p241, %p242
      %p245 = scmp.ne.s32.totalorder %s230, %s244
      %p246 = scmp.eq.s32.totalorder %s27, 0
      %p247 = por %p245, %p246
      %s249 = sadd.s32 %s248, 1
      %p252 = scmp.eq.s32.totalorder %s21, 1
      %p253 = scmp.ne.s32.totalorder %s248, %s250
      %p254 = scmp.eq.s32.totalorder %s21, 0
      %p255 = por %p253, %p254
      %p256 = scmp.ne.s32.totalorder %s248, %s250
      %p257 = scmp.eq.s32.totalorder %s26, 1
      %p258 = por %p256, %p257
      %p259 = scmp.ne.s32.totalorder %s250, %s251
      %p260 = scmp.eq.s32.totalorder %s26, 0
      %p261 = por %p259, %p260
      %p262 = scmp.ne.s32.totalorder %s250, %s251
      %p263 = scmp.eq.s32.totalorder %s27, 1
      %p264 = por %p262, %p263
      %p266 = scmp.ne.s32.totalorder %s251, %s265
      %p267 = scmp.eq.s32.totalorder %s27, 0
      %p268 = por %p266, %p267
      %s270 = sadd.s32 %s269, 1
      %p273 = scmp.eq.s32.totalorder %s21, 1
      %p274 = scmp.ne.s32.totalorder %s269, %s271
      %p275 = scmp.eq.s32.totalorder %s21, 0
      %p276 = por %p274, %p275
      %p277 = scmp.ne.s32.totalorder %s269, %s271
      %p278 = scmp.eq.s32.totalorder %s26, 1
      %p279 = por %p277, %p278
      %p280 = scmp.ne.s32.totalorder %s271, %s272
      %p281 = scmp.eq.s32.totalorder %s26, 0
      %p282 = por %p280, %p281
      %p283 = scmp.ne.s32.totalorder %s271, %s272
      %p284 = scmp.eq.s32.totalorder %s27, 1
      %p285 = por %p283, %p284
      %p287 = scmp.ne.s32.totalorder %s272, %s286
      %p288 = scmp.eq.s32.totalorder %s27, 0
      %p289 = por %p287, %p288
      %s291 = sadd.s32 %s290, 1
      %p294 = scmp.eq.s32.totalorder %s21, 1
      %p295 = scmp.ne.s32.totalorder %s290, %s292
      %p296 = scmp.eq.s32.totalorder %s21, 0
      %p297 = por %p295, %p296
      %p298 = scmp.ne.s32.totalorder %s290, %s292
      %p299 = scmp.eq.s32.totalorder %s26, 1
      %p300 = por %p298, %p299
      %p301 = scmp.ne.s32.totalorder %s292, %s293
      %p302 = scmp.eq.s32.totalorder %s26, 0
      %p303 = por %p301, %p302
      %p304 = scmp.ne.s32.totalorder %s292, %s293
      %p305 = scmp.eq.s32.totalorder %s27, 1
      %p306 = por %p304, %p305
      %p308 = scmp.ne.s32.totalorder %s293, %s307
      %p309 = scmp.eq.s32.totalorder %s27, 0
      %p310 = por %p308, %p309
      %s311 = ssub.s32 %s21, %s28
      %p312 = scmp.eq.s32.totalorder %s311, 0
      %s314 = sadd.s32 %s313, 1
      %s315 = scalar_select %p312, %s313, %s314
      %p318 = pneg %p312
      %p319 = scmp.eq.s32.totalorder %s21, 1
      %p320 = por %p318, %p319
      %p321 = scmp.ne.s32.totalorder %s313, %s316
      %p322 = scmp.eq.s32.totalorder %s21, 0
      %p323 = por %p321, %p322
      %p324 = scmp.ne.s32.totalorder %s313, %s316
      %p325 = scmp.eq.s32.totalorder %s26, 1
      %p326 = por %p324, %p325
      %p327 = scmp.ne.s32.totalorder %s316, %s317
      %p328 = scmp.eq.s32.totalorder %s26, 0
      %p329 = por %p327, %p328
      %p330 = scmp.ne.s32.totalorder %s316, %s317
      %p331 = scmp.eq.s32.totalorder %s27, 1
      %p332 = por %p330, %p331
      %p334 = scmp.ne.s32.totalorder %s317, %s333
      %p335 = scmp.eq.s32.totalorder %s27, 0
      %p336 = por %p334, %p335
      %s337 = ssub.s32 %s21, %s28
      %p338 = scmp.eq.s32.totalorder %s337, 0
      %s340 = sadd.s32 %s339, 1
      %s341 = scalar_select %p338, %s339, %s340
      %p344 = pneg %p338
      %p345 = scmp.eq.s32.totalorder %s21, 1
      %p346 = por %p344, %p345
      %p347 = scmp.ne.s32.totalorder %s339, %s342
      %p348 = scmp.eq.s32.totalorder %s21, 0
      %p349 = por %p347, %p348
      %p350 = scmp.ne.s32.totalorder %s339, %s342
      %p351 = scmp.eq.s32.totalorder %s26, 1
      %p352 = por %p350, %p351
      %p353 = scmp.ne.s32.totalorder %s342, %s343
      %p354 = scmp.eq.s32.totalorder %s26, 0
      %p355 = por %p353, %p354
      %p356 = scmp.ne.s32.totalorder %s342, %s343
      %p357 = scmp.eq.s32.totalorder %s27, 1
      %p358 = por %p356, %p357
      %p360 = scmp.ne.s32.totalorder %s343, %s359
      %p361 = scmp.eq.s32.totalorder %s27, 0
      %p362 = por %p360, %p361
      %p363 = scmp.le.s32.totalorder 1, %s21
      %p364 = scmp.lt.s32.totalorder %s21, 3
      %p365 = pnand %p363, %p364
      %p366 = pneg %p365
      // Predicated region
      $region9: #{tpu_custom_call.1} parent=5 // pred_check
        _
      $region10: #{tpu_custom_call.1} parent=5 // pred_check_branch
        %368 = sbr.rel (%p365) target = $region12
      $region11: #{tpu_custom_call.1} parent=5 // pred_region
        %s369 = ssub.s32 %s21, 1
        // Predicated region
        $region13: #{tpu_custom_call.1} parent=11 // pred_check
          %p370 = pneg %p198
        $region14: #{tpu_custom_call.1} parent=11 // pred_check_branch
          %372 = sbr.rel (%p370) target = $region16
        $region15: #{tpu_custom_call.1} parent=11 // pred_region
          _
        $region16: #{tpu_custom_call.1} parent=11 // pred_fallthru
          _
        // Predicated region
        $region17: #{tpu_custom_call.1} parent=11 // pred_check
          %p373 = pneg %p219
        $region18: #{tpu_custom_call.1} parent=11 // pred_check_branch
          %375 = sbr.rel (%p373) target = $region20
        $region19: #{tpu_custom_call.1} parent=11 // pred_region
          %s377 = ssub.s32 4096, 4096
          %378 = vsyncadd [#allocation3], %s377
          %s379 = sshll.u32 [#allocation2], 4
          %s380 = int_to_ptr.vmem [resolvable:$true] %s379
          %385 = dma.hbm_to_vmem [thread:$0]  %s7, 4096, %s380, [#allocation3], 256, 256, 16
        $region20: #{tpu_custom_call.1} parent=11 // pred_fallthru
          _
        // Predicated region
        $region21: #{tpu_custom_call.1} parent=11 // pred_check
          %p386 = pneg %p240
        $region22: #{tpu_custom_call.1} parent=11 // pred_check_branch
          %388 = sbr.rel (%p386) target = $region24
        $region23: #{tpu_custom_call.1} parent=11 // pred_region
          _
        $region24: #{tpu_custom_call.1} parent=11 // pred_fallthru
          _
        // Predicated region
        $region25: #{tpu_custom_call.1} parent=11 // pred_check
          %p389 = pneg %p261
        $region26: #{tpu_custom_call.1} parent=11 // pred_check_branch
          %391 = sbr.rel (%p389) target = $region28
        $region27: #{tpu_custom_call.1} parent=11 // pred_region
          _
        $region28: #{tpu_custom_call.1} parent=11 // pred_fallthru
          _
        // Predicated region
        $region29: #{tpu_custom_call.1} parent=11 // pred_check
          %p392 = pneg %p282
        $region30: #{tpu_custom_call.1} parent=11 // pred_check_branch
          %394 = sbr.rel (%p392) target = $region32
        $region31: #{tpu_custom_call.1} parent=11 // pred_region
          _
        $region32: #{tpu_custom_call.1} parent=11 // pred_fallthru
          _
        // Predicated region
        $region33: #{tpu_custom_call.1} parent=11 // pred_check
          %p395 = pneg %p303
        $region34: #{tpu_custom_call.1} parent=11 // pred_check_branch
          %397 = sbr.rel (%p395) target = $region36
        $region35: #{tpu_custom_call.1} parent=11 // pred_region
          _
        $region36: #{tpu_custom_call.1} parent=11 // pred_fallthru
          _
      $region12: #{tpu_custom_call.1} parent=5 // pred_fallthru
        _
      %p398 = scmp.lt.s32.totalorder %s21, 2
      // Predicated region
      $region37: #{tpu_custom_call.1} parent=5 // pred_check
        %p399 = pneg %p398
      $region38: #{tpu_custom_call.1} parent=5 // pred_check_branch
        %401 = sbr.rel (%p399) target = $region40
      $region39: #{tpu_custom_call.1} parent=5 // pred_region
        // Predicated region
        $region41: #{tpu_custom_call.1} parent=39 // pred_check
          %p402 = pneg %p41
        $region42: #{tpu_custom_call.1} parent=39 // pred_check_branch
          %404 = sbr.rel (%p402) target = $region44
        $region43: #{tpu_custom_call.1} parent=39 // pred_region
          %p405 = scmp.lt.s32.totalorder %s21, 1
          %s406 = scalar_select %p405, %s21, 1
          %s407 = smul.addr %s406, 4
          %s408 = scalar_lea.vmem %s0, %s407
        $region44: #{tpu_custom_call.1} parent=39 // pred_fallthru
          _
        // Predicated region
        $region45: #{tpu_custom_call.1} parent=39 // pred_check
          %p409 = pneg %p67
        $region46: #{tpu_custom_call.1} parent=39 // pred_check_branch
          %411 = sbr.rel (%p409) target = $region48
        $region47: #{tpu_custom_call.1} parent=39 // pred_region
          %p412 = scmp.lt.s32.totalorder %s21, 1
          %s413 = scalar_select %p412, %s21, 1
          %s414 = smul.addr %s413, 8
          %s415 = scalar_lea.vmem %s1, %s414
        $region48: #{tpu_custom_call.1} parent=39 // pred_fallthru
          _
        // Predicated region
        $region49: #{tpu_custom_call.1} parent=39 // pred_check
          %p416 = pneg %p93
        $region50: #{tpu_custom_call.1} parent=39 // pred_check_branch
          %418 = sbr.rel (%p416) target = $region52
        $region51: #{tpu_custom_call.1} parent=39 // pred_region
          %p419 = scmp.lt.s32.totalorder %s21, 1
          %s420 = scalar_select %p419, %s21, 1
          %s421 = smul.addr %s420, 8
          %s422 = scalar_lea.vmem %s2, %s421
        $region52: #{tpu_custom_call.1} parent=39 // pred_fallthru
          _
        // Predicated region
        $region53: #{tpu_custom_call.1} parent=39 // pred_check
          %p423 = pneg %p119
        $region54: #{tpu_custom_call.1} parent=39 // pred_check_branch
          %425 = sbr.rel (%p423) target = $region56
        $region55: #{tpu_custom_call.1} parent=39 // pred_region
          %p426 = scmp.lt.s32.totalorder %s21, 1
          %s427 = scalar_select %p426, %s21, 1
          %s428 = smul.addr %s427, 8
          %s429 = scalar_lea.vmem %s3, %s428
        $region56: #{tpu_custom_call.1} parent=39 // pred_fallthru
          _
        // Predicated region
        $region57: #{tpu_custom_call.1} parent=39 // pred_check
          %p430 = pneg %p145
        $region58: #{tpu_custom_call.1} parent=39 // pred_check_branch
          %432 = sbr.rel (%p430) target = $region60
        $region59: #{tpu_custom_call.1} parent=39 // pred_region
          %p433 = scmp.lt.s32.totalorder %s21, 1
          %s434 = scalar_select %p433, %s21, 1
          %s435 = scalar_lea.vmem %s4, %s434
        $region60: #{tpu_custom_call.1} parent=39 // pred_fallthru
          _
        // Predicated region
        $region61: #{tpu_custom_call.1} parent=39 // pred_check
          %p436 = pneg %p171
        $region62: #{tpu_custom_call.1} parent=39 // pred_check_branch
          %438 = sbr.rel (%p436) target = $region64
        $region63: #{tpu_custom_call.1} parent=39 // pred_region
          %p439 = scmp.lt.s32.totalorder %s21, 1
          %s440 = scalar_select %p439, %s21, 1
          %s441 = smul.addr %s440, 8
          %s442 = scalar_lea.vmem %s5, %s441
        $region64: #{tpu_custom_call.1} parent=39 // pred_fallthru
          _
      $region40: #{tpu_custom_call.1} parent=5 // pred_fallthru
        _
      %p443 = scmp.le.s32.totalorder 1, %s21
      %p444 = scmp.lt.s32.totalorder %s21, 3
      %p445 = pnand %p443, %p444
      %p446 = pneg %p445
      // Predicated region
      $region65: #{tpu_custom_call.1} parent=5 // pred_check
        _
      $region66: #{tpu_custom_call.1} parent=5 // pred_check_branch
        %448 = sbr.rel (%p445) target = $region68
      $region67: #{tpu_custom_call.1} parent=5 // pred_region
        %s449 = ssub.s32 %s21, 1
        // Predicated region
        $region69: #{tpu_custom_call.1} parent=67 // pred_check
          %p450 = pneg %p219
        $region70: #{tpu_custom_call.1} parent=67 // pred_check_branch
          %452 = sbr.rel (%p450) target = $region72
        $region71: #{tpu_custom_call.1} parent=67 // pred_region
          %453 = dma.done [#allocation3], 4096
        $region72: #{tpu_custom_call.1} parent=67 // pred_fallthru
          _
        %p454 = scmp.lt.s32.totalorder %s26, 1
        %s455 = scalar_select %p454, %s26, 1
        %s456 = smul.addr %s455, 4
        %s457 = scalar_lea.vmem %s0, %s456
        %p458 = pneg %p47
        %p459 = pneg %p44
        %p460 = scmp.lt.s32.totalorder %s26, 1
        %s461 = scalar_select %p460, %s26, 1
        %s462 = smul.addr %s461, 8
        %s463 = scalar_lea.vmem %s1, %s462
        %p464 = pneg %p73
        %p465 = pneg %p70
        %p466 = scmp.lt.s32.totalorder %s26, 1
        %s467 = scalar_select %p466, %s26, 1
        %s468 = smul.addr %s467, 8
        %s469 = scalar_lea.vmem %s2, %s468
        %p470 = pneg %p99
        %p471 = pneg %p96
        %p472 = scmp.lt.s32.totalorder %s26, 1
        %s473 = scalar_select %p472, %s26, 1
        %s474 = smul.addr %s473, 8
        %s475 = scalar_lea.vmem %s3, %s474
        %p476 = pneg %p125
        %p477 = pneg %p122
        %p478 = scmp.lt.s32.totalorder %s26, 1
        %s479 = scalar_select %p478, %s26, 1
        %s480 = scalar_lea.vmem %s4, %s479
        %p481 = pneg %p151
        %p482 = pneg %p148
        %p483 = scmp.lt.s32.totalorder %s26, 1
        %s484 = scalar_select %p483, %s26, 1
        %s485 = smul.addr %s484, 8
        %s486 = scalar_lea.vmem %s5, %s485
        %p487 = pneg %p177
        %p488 = pneg %p174
        %p489 = pneg %p198
        %p490 = pneg %p195
        %p491 = pneg %p219
        %p492 = pneg %p216
        %p493 = pneg %p240
        %p494 = pneg %p237
        %p495 = pneg %p261
        %p496 = pneg %p258
        %p497 = pneg %p282
        %p498 = pneg %p279
        %p499 = pneg %p303
        %p500 = pneg %p300
        %p501 = pneg %p329
        %p502 = pneg %p326
        %p503 = scmp.lt.s32.totalorder %s26, 1
        %s504 = scalar_select %p503, %s26, 1
        %s505 = smul.addr %s504, 8
        %s506 = scalar_lea.vmem %s12, %s505
        %p507 = pneg %p355
        %p508 = pneg %p352
        %p509 = scmp.lt.s32.totalorder %s26, 1
        %s510 = scalar_select %p509, %s26, 1
        %s511 = smul.addr %s510, 8
        %s512 = scalar_lea.vmem %s13, %s511
        %p513 = scmp.lt.s32.totalorder %s26, 1
        %s514 = scalar_select %p513, %s26, 1
        %s515 = smul.addr %s514, 4
        %s516 = scalar_lea.vmem %s0, %s515
        %p517 = scmp.lt.s32.totalorder %s26, 1
        %s518 = scalar_select %p517, %s26, 1
        %s519 = smul.addr %s518, 8
        %s520 = scalar_lea.vmem %s1, %s519
        %p521 = scmp.lt.s32.totalorder %s26, 1
        %s522 = scalar_select %p521, %s26, 1
        %s523 = smul.addr %s522, 8
        %s524 = scalar_lea.vmem %s2, %s523
        %p525 = scmp.lt.s32.totalorder %s26, 1
        %s526 = scalar_select %p525, %s26, 1
        %s527 = smul.addr %s526, 8
        %s528 = scalar_lea.vmem %s3, %s527
        %p529 = scmp.lt.s32.totalorder %s26, 1
        %s530 = scalar_select %p529, %s26, 1
        %s531 = scalar_lea.vmem %s4, %s530
        %p532 = scmp.lt.s32.totalorder %s26, 1
        %s533 = scalar_select %p532, %s26, 1
        %s534 = smul.addr %s533, 8
        %s535 = scalar_lea.vmem %s5, %s534
        %p536 = scmp.lt.s32.totalorder %s26, 1
        %s537 = scalar_select %p536, %s26, 1
        %s538 = smul.addr %s537, 8
        %s539 = scalar_lea.vmem %s12, %s538
        %p540 = scmp.lt.s32.totalorder %s26, 1
        %s541 = scalar_select %p540, %s26, 1
        %s542 = smul.addr %s541, 8
        %s543 = scalar_lea.vmem %s13, %s542
        %v545 = vld [vmem:[%s516] sm:$0x7]
        %v546 = vld [vmem:[%s520] sm:$0x1f]
        %v547 = vld [vmem:[%s524] sm:$0x1f]
        %v548 = vld [vmem:[%s528] sm:$0x1f]
        %v549 = vld [vmem:[%s531] sm:$0x1]
        %v550 = vld [vmem:[%s535] sm:$0x1f]
        %v551 = vld [vmem:[%s11] sm:$0xff]
        %v552 = vld [vmem:[%s11 + $0x8] sm:$0xff]
        %v553 = vld [vmem:[%s11 + $0x10] sm:$0xff]
        %v554 = vld [vmem:[%s11 + $0x18] sm:$0xff]
        %v555 = vld [vmem:[%s6] sm:$0xf]
        %v556 = vld [vmem:[%s6 + $0x4] sm:$0xf]
        %v557 = vlaneseq
        %v558 = vshrl.u32 %v557, 7
        %v559 = vsub.s32 0, %v558
        %v560 = vrot.slane %v551, %v559
        %v563 = vunpack.c.l.b16 %v555
        %v564 = vunpack.c.l.b16 %v556
        %v565 = vpack.c.b16 %v564, %v563
        %vm567 = vcmask 130048
        %v569 = vsel %vm567, %v545, 0
        %571 = vmatprep.subr.bf16.mxu0 0
        %572 = vmatpush1.bf16.msra.mxu0 %v565
        %573 = vmatprep.subr.bf16.mxu0 0
        %574 = vmatpush1.bf16.msra.mxu0 0
        %575 = vmatprep.subr.bf16.mxu0 0
        %576 = vmatpush1.bf16.msra.mxu0 0
        %577 = vmatprep.subr.bf16.mxu0 0
        %578 = vmatpush1.bf16.msra.mxu0 0
        %579 = vmatprep.subr.bf16.mxu0 0
        %580 = vmatpush1.bf16.msra.mxu0 0
        %581 = vmatprep.subr.bf16.mxu0 0
        %582 = vmatpush1.bf16.msra.mxu0 0
        %583 = vmatprep.subr.bf16.mxu0 0
        %584 = vmatpush1.bf16.msra.mxu0 0
        %585 = vmatprep.subr.bf16.mxu0 0
        %586 = vmatpush1.bf16.msra.mxu0 0
        %587 = vmatprep.subr.bf16.mxu0 0
        %588 = vmatpush1.bf16.msra.mxu0 0
        %589 = vmatprep.subr.bf16.mxu0 0
        %590 = vmatpush1.bf16.msra.mxu0 0
        %591 = vmatprep.subr.bf16.mxu0 0
        %592 = vmatpush1.bf16.msra.mxu0 0
        %593 = vmatprep.subr.bf16.mxu0 0
        %594 = vmatpush1.bf16.msra.mxu0 0
        %595 = vmatprep.subr.bf16.mxu0 0
        %596 = vmatpush1.bf16.msra.mxu0 0
        %597 = vmatprep.subr.bf16.mxu0 0
        %598 = vmatpush1.bf16.msra.mxu0 0
        %599 = vmatprep.subr.bf16.mxu0 0
        %600 = vmatpush1.bf16.msra.mxu0 0
        %601 = vmatprep.subr.bf16.mxu0 0
        %602 = vmatpush1.bf16.msra.mxu0 0
        %603 = vmatprep.mubr.bf16.mxu0 0
        %604 = vmatmul.mubr.bf16.gmra.mrb[0].mxu0 %v569
        %v605 = vpop.f32.mrb[0].mxu0
        %v606 = vadd.f32 %v560, %v605
        %v607 = vpop.f32.mrb[0].mxu0
        %v608 = vpop.f32.mrb[0].mxu0
        %v609 = vpop.f32.mrb[0].mxu0
        %610 = vdwg.mxu0
        %v611 = vmax.f32 %v606, 0.0
        %v612 = vpack.c.bf16 %v611, %v611
        %v613 = vld [vmem:[#allocation2] sm:$0xff]
        %v614 = vld [vmem:[#allocation2 + $0x8] sm:$0xff]
        %v615 = vld [vmem:[#allocation2 + $0x10] sm:$0xff]
        %v616 = vld [vmem:[#allocation2 + $0x18] sm:$0xff]
        %v617 = vld [vmem:[#allocation2 + $0x20] sm:$0xff]
        %v618 = vld [vmem:[#allocation2 + $0x28] sm:$0xff]
        %v619 = vld [vmem:[#allocation2 + $0x30] sm:$0xff]
        %v620 = vld [vmem:[#allocation2 + $0x38] sm:$0xff]
        %v621 = vld [vmem:[#allocation2 + $0x40] sm:$0xff]
        %v622 = vld [vmem:[#allocation2 + $0x48] sm:$0xff]
        %v623 = vld [vmem:[#allocation2 + $0x50] sm:$0xff]
        %v624 = vld [vmem:[#allocation2 + $0x58] sm:$0xff]
        %v625 = vld [vmem:[#allocation2 + $0x60] sm:$0xff]
        %v626 = vld [vmem:[#allocation2 + $0x68] sm:$0xff]
        %v627 = vld [vmem:[#allocation2 + $0x70] sm:$0xff]
        %v628 = vld [vmem:[#allocation2 + $0x78] sm:$0xff]
        %v629 = vld [vmem:[#allocation2 + $0x80] sm:$0xff]
        %v630 = vld [vmem:[#allocation2 + $0x88] sm:$0xff]
        %v631 = vld [vmem:[#allocation2 + $0x90] sm:$0xff]
        %v632 = vld [vmem:[#allocation2 + $0x98] sm:$0xff]
        %v633 = vld [vmem:[#allocation2 + $0xa0] sm:$0xff]
        %v634 = vld [vmem:[#allocation2 + $0xa8] sm:$0xff]
        %v635 = vld [vmem:[#allocation2 + $0xb0] sm:$0xff]
        %v636 = vld [vmem:[#allocation2 + $0xb8] sm:$0xff]
        %v637 = vld [vmem:[#allocation2 + $0xc0] sm:$0xff]
        %v638 = vld [vmem:[#allocation2 + $0xc8] sm:$0xff]
        %v639 = vld [vmem:[#allocation2 + $0xd0] sm:$0xff]
        %v640 = vld [vmem:[#allocation2 + $0xd8] sm:$0xff]
        %v641 = vld [vmem:[#allocation2 + $0xe0] sm:$0xff]
        %v642 = vld [vmem:[#allocation2 + $0xe8] sm:$0xff]
        %v643 = vld [vmem:[#allocation2 + $0xf0] sm:$0xff]
        %v644 = vld [vmem:[#allocation2 + $0xf8] sm:$0xff]
        %v645 = vlaneseq
        %v646 = vshrl.u32 %v645, 7
        %v647 = vsub.s32 1, %v646
        %v648 = vrot.slane %v551, %v647
        %v649 = vlaneseq
        %v650 = vshrl.u32 %v649, 7
        %v651 = vsub.s32 1, %v650
        %v652 = vrot.slane %v552, %v651
        %v653 = vlaneseq
        %v654 = vshrl.u32 %v653, 7
        %v655 = vsub.s32 1, %v654
        %v656 = vrot.slane %v553, %v655
        %v657 = vlaneseq
        %v658 = vshrl.u32 %v657, 7
        %v659 = vsub.s32 1, %v658
        %v660 = vrot.slane %v554, %v659
        %v693 = vunpack.c.l.b16 %v613
        %v694 = vunpack.c.h.b16 %v613
        %v695 = vunpack.c.l.b16 %v614
        %v696 = vunpack.c.h.b16 %v614
        %v697 = vunpack.c.l.b16 %v615
        %v698 = vunpack.c.h.b16 %v615
        %v699 = vunpack.c.l.b16 %v616
        %v700 = vunpack.c.h.b16 %v616
        %v701 = vunpack.c.l.b16 %v617
        %v702 = vunpack.c.h.b16 %v617
        %v703 = vunpack.c.l.b16 %v618
        %v704 = vunpack.c.h.b16 %v618
        %v705 = vunpack.c.l.b16 %v619
        %v706 = vunpack.c.h.b16 %v619
        %v707 = vunpack.c.l.b16 %v620
        %v708 = vunpack.c.h.b16 %v620
        %v709 = vunpack.c.l.b16 %v621
        %v710 = vunpack.c.h.b16 %v621
        %v711 = vunpack.c.l.b16 %v622
        %v712 = vunpack.c.h.b16 %v622
        %v713 = vunpack.c.l.b16 %v623
        %v714 = vunpack.c.h.b16 %v623
        %v715 = vunpack.c.l.b16 %v624
        %v716 = vunpack.c.h.b16 %v624
        %v717 = vunpack.c.l.b16 %v625
        %v718 = vunpack.c.h.b16 %v625
        %v719 = vunpack.c.l.b16 %v626
        %v720 = vunpack.c.h.b16 %v626
        %v721 = vunpack.c.l.b16 %v627
        %v722 = vunpack.c.h.b16 %v627
        %v723 = vunpack.c.l.b16 %v628
        %v724 = vunpack.c.h.b16 %v628
        %v725 = vunpack.c.l.b16 %v629
        %v726 = vunpack.c.h.b16 %v629
        %v727 = vunpack.c.l.b16 %v630
        %v728 = vunpack.c.h.b16 %v630
        %v729 = vunpack.c.l.b16 %v631
        %v730 = vunpack.c.h.b16 %v631
        %v731 = vunpack.c.l.b16 %v632
        %v732 = vunpack.c.h.b16 %v632
        %v733 = vunpack.c.l.b16 %v633
        %v734 = vunpack.c.h.b16 %v633
        %v735 = vunpack.c.l.b16 %v634
        %v736 = vunpack.c.h.b16 %v634
        %v737 = vunpack.c.l.b16 %v635
        %v738 = vunpack.c.h.b16 %v635
        %v739 = vunpack.c.l.b16 %v636
        %v740 = vunpack.c.h.b16 %v636
        %v741 = vunpack.c.l.b16 %v637
        %v742 = vunpack.c.h.b16 %v637
        %v743 = vunpack.c.l.b16 %v638
        %v744 = vunpack.c.h.b16 %v638
        %v745 = vunpack.c.l.b16 %v639
        %v746 = vunpack.c.h.b16 %v639
        %v747 = vunpack.c.l.b16 %v640
        %v748 = vunpack.c.h.b16 %v640
        %v749 = vunpack.c.l.b16 %v641
        %v750 = vunpack.c.h.b16 %v641
        %v751 = vunpack.c.l.b16 %v642
        %v752 = vunpack.c.h.b16 %v642
        %v753 = vunpack.c.l.b16 %v643
        %v754 = vunpack.c.h.b16 %v643
        %v755 = vunpack.c.l.b16 %v644
        %v756 = vunpack.c.h.b16 %v644
        %v757 = vpack.c.b16 %v697, %v693
        %v758 = vpack.c.b16 %v698, %v694
        %v759 = vpack.c.b16 %v699, %v695
        %v760 = vpack.c.b16 %v700, %v696
        %v761 = vpack.c.b16 %v705, %v701
        %v762 = vpack.c.b16 %v706, %v702
        %v763 = vpack.c.b16 %v707, %v703
        %v764 = vpack.c.b16 %v708, %v704
        %v765 = vpack.c.b16 %v713, %v709
        %v766 = vpack.c.b16 %v714, %v710
        %v767 = vpack.c.b16 %v715, %v711
        %v768 = vpack.c.b16 %v716, %v712
        %v769 = vpack.c.b16 %v721, %v717
        %v770 = vpack.c.b16 %v722, %v718
        %v771 = vpack.c.b16 %v723, %v719
        %v772 = vpack.c.b16 %v724, %v720
        %v773 = vpack.c.b16 %v729, %v725
        %v774 = vpack.c.b16 %v730, %v726
        %v775 = vpack.c.b16 %v731, %v727
        %v776 = vpack.c.b16 %v732, %v728
        %v777 = vpack.c.b16 %v737, %v733
        %v778 = vpack.c.b16 %v738, %v734
        %v779 = vpack.c.b16 %v739, %v735
        %v780 = vpack.c.b16 %v740, %v736
        %v781 = vpack.c.b16 %v745, %v741
        %v782 = vpack.c.b16 %v746, %v742
        %v783 = vpack.c.b16 %v747, %v743
        %v784 = vpack.c.b16 %v748, %v744
        %v785 = vpack.c.b16 %v753, %v749
        %v786 = vpack.c.b16 %v754, %v750
        %v787 = vpack.c.b16 %v755, %v751
        %v788 = vpack.c.b16 %v756, %v752
        %821 = vmatprep.subr.bf16.mxu0 %v758
        %822 = vmatpush1.bf16.msra.mxu0 %v757
        %823 = vmatprep.subr.bf16.mxu0 %v762
        %824 = vmatpush1.bf16.msra.mxu0 %v761
        %825 = vmatprep.subr.bf16.mxu0 %v766
        %826 = vmatpush1.bf16.msra.mxu0 %v765
        %827 = vmatprep.subr.bf16.mxu0 %v770
        %828 = vmatpush1.bf16.msra.mxu0 %v769
        %829 = vmatprep.subr.bf16.mxu0 %v774
        %830 = vmatpush1.bf16.msra.mxu0 %v773
        %831 = vmatprep.subr.bf16.mxu0 %v778
        %832 = vmatpush1.bf16.msra.mxu0 %v777
        %833 = vmatprep.subr.bf16.mxu0 %v782
        %834 = vmatpush1.bf16.msra.mxu0 %v781
        %835 = vmatprep.subr.bf16.mxu0 %v786
        %836 = vmatpush1.bf16.msra.mxu0 %v785
        %837 = vmatprep.subr.bf16.mxu0 0
        %838 = vmatpush1.bf16.msra.mxu0 0
        %839 = vmatprep.subr.bf16.mxu0 0
        %840 = vmatpush1.bf16.msra.mxu0 0
        %841 = vmatprep.subr.bf16.mxu0 0
        %842 = vmatpush1.bf16.msra.mxu0 0
        %843 = vmatprep.subr.bf16.mxu0 0
        %844 = vmatpush1.bf16.msra.mxu0 0
        %845 = vmatprep.subr.bf16.mxu0 0
        %846 = vmatpush1.bf16.msra.mxu0 0
        %847 = vmatprep.subr.bf16.mxu0 0
        %848 = vmatpush1.bf16.msra.mxu0 0
        %849 = vmatprep.subr.bf16.mxu0 0
        %850 = vmatpush1.bf16.msra.mxu0 0
        %851 = vmatprep.subr.bf16.mxu0 0
        %852 = vmatpush1.bf16.msra.mxu0 0
        %853 = vmatprep.mubr.bf16.mxu0 0
        %854 = vmatmul.mubr.bf16.gmra.mrb[0].mxu0 %v612
        %v855 = vpop.f32.mrb[0].mxu0
        %v856 = vadd.f32 %v648, %v855
        %v857 = vpop.f32.mrb[0].mxu0
        %v858 = vadd.f32 %v652, %v857
        %v859 = vpop.f32.mrb[0].mxu0
        %v860 = vpop.f32.mrb[0].mxu0
        %861 = vdwg.mxu0
        %862 = vmatprep.subr.bf16.mxu0 %v760
        %863 = vmatpush1.bf16.msra.mxu0 %v759
        %864 = vmatprep.subr.bf16.mxu0 %v764
        %865 = vmatpush1.bf16.msra.mxu0 %v763
        %866 = vmatprep.subr.bf16.mxu0 %v768
        %867 = vmatpush1.bf16.msra.mxu0 %v767
        %868 = vmatprep.subr.bf16.mxu0 %v772
        %869 = vmatpush1.bf16.msra.mxu0 %v771
        %870 = vmatprep.subr.bf16.mxu0 %v776
        %871 = vmatpush1.bf16.msra.mxu0 %v775
        %872 = vmatprep.subr.bf16.mxu0 %v780
        %873 = vmatpush1.bf16.msra.mxu0 %v779
        %874 = vmatprep.subr.bf16.mxu0 %v784
        %875 = vmatpush1.bf16.msra.mxu0 %v783
        %876 = vmatprep.subr.bf16.mxu0 %v788
        %877 = vmatpush1.bf16.msra.mxu0 %v787
        %878 = vmatprep.subr.bf16.mxu0 0
        %879 = vmatpush1.bf16.msra.mxu0 0
        %880 = vmatprep.subr.bf16.mxu0 0
        %881 = vmatpush1.bf16.msra.mxu0 0
        %882 = vmatprep.subr.bf16.mxu0 0
        %883 = vmatpush1.bf16.msra.mxu0 0
        %884 = vmatprep.subr.bf16.mxu0 0
        %885 = vmatpush1.bf16.msra.mxu0 0
        %886 = vmatprep.subr.bf16.mxu0 0
        %887 = vmatpush1.bf16.msra.mxu0 0
        %888 = vmatprep.subr.bf16.mxu0 0
        %889 = vmatpush1.bf16.msra.mxu0 0
        %890 = vmatprep.subr.bf16.mxu0 0
        %891 = vmatpush1.bf16.msra.mxu0 0
        %892 = vmatprep.subr.bf16.mxu0 0
        %893 = vmatpush1.bf16.msra.mxu0 0
        %894 = vmatprep.mubr.bf16.mxu0 0
        %895 = vmatmul.mubr.bf16.gmra.mrb[0].mxu0 %v612
        %v896 = vpop.f32.mrb[0].mxu0
        %v897 = vadd.f32 %v656, %v896
        %v898 = vpop.f32.mrb[0].mxu0
        %v899 = vadd.f32 %v660, %v898
        %v900 = vpop.f32.mrb[0].mxu0
        %v901 = vpop.f32.mrb[0].mxu0
        %902 = vdwg.mxu0
        %v903 = vmax.f32 %v897, 0.0
        %v905 = vsel %vm567, %v856, 0
        %v908 = vsel %vm567, %v858, 0
        %910 = vmatprep.subr.mxu0 0.0
        %911 = vmatpush1.xpose.msra.mxu0 %v908
        %912 = vmatprep.subr.mxu0 0.0
        %913 = vmatpush1.xpose.msra.mxu0 0.0
        %914 = vmatprep.subr.mxu0 0.0
        %915 = vmatpush1.xpose.msra.mxu0 0.0
        %916 = vmatprep.subr.mxu0 0.0
        %917 = vmatpush1.xpose.msra.mxu0 0.0
        %918 = vmatprep.subr.mxu0 0.0
        %919 = vmatpush1.xpose.msra.mxu0 0.0
        %920 = vmatprep.subr.mxu0 0.0
        %921 = vmatpush1.xpose.msra.mxu0 0.0
        %922 = vmatprep.subr.mxu0 0.0
        %923 = vmatpush1.xpose.msra.mxu0 0.0
        %924 = vmatprep.subr.mxu0 0.0
        %925 = vmatpush1.xpose.msra.mxu0 0.0
        %926 = vmatprep.subr.mxu0 0.0
        %927 = vmatpush1.xpose.msra.mxu0 0.0
        %928 = vmatprep.subr.mxu0 0.0
        %929 = vmatpush1.xpose.msra.mxu0 0.0
        %930 = vmatprep.subr.mxu0 0.0
        %931 = vmatpush1.xpose.msra.mxu0 0.0
        %932 = vmatprep.subr.mxu0 0.0
        %933 = vmatpush1.xpose.msra.mxu0 0.0
        %934 = vmatprep.subr.mxu0 0.0
        %935 = vmatpush1.xpose.msra.mxu0 0.0
        %936 = vmatprep.subr.mxu0 0.0
        %937 = vmatpush1.xpose.msra.mxu0 0.0
        %938 = vmatprep.subr.mxu0 0.0
        %939 = vmatpush1.xpose.msra.mxu0 0.0
        %940 = vmatprep.subr.mxu0 0.0
        %941 = vmatpush1.xpose.msra.mxu0 0.0
        %942 = vmatprep.subr.mxu0 0.0
        %943 = vmatpush1.xpose.msra.mxu0 0.0
        %944 = vmatprep.subr.mxu0 0.0
        %945 = vmatpush1.xpose.msra.mxu0 0.0
        %946 = vmatprep.subr.mxu0 0.0
        %947 = vmatpush1.xpose.msra.mxu0 0.0
        %948 = vmatprep.subr.mxu0 0.0
        %949 = vmatpush1.xpose.msra.mxu0 0.0
        %950 = vmatprep.subr.mxu0 0.0
        %951 = vmatpush1.xpose.msra.mxu0 0.0
        %952 = vmatprep.subr.mxu0 0.0
        %953 = vmatpush1.xpose.msra.mxu0 0.0
        %954 = vmatprep.subr.mxu0 0.0
        %955 = vmatpush1.xpose.msra.mxu0 0.0
        %956 = vmatprep.subr.mxu0 0.0
        %957 = vmatpush1.xpose.msra.mxu0 0.0
        %958 = vmatprep.subr.mxu0 0.0
        %959 = vmatpush1.xpose.msra.mxu0 0.0
        %960 = vmatprep.subr.mxu0 0.0
        %961 = vmatpush1.xpose.msra.mxu0 0.0
        %962 = vmatprep.subr.mxu0 0.0
        %963 = vmatpush1.xpose.msra.mxu0 0.0
        %964 = vmatprep.subr.mxu0 0.0
        %965 = vmatpush1.xpose.msra.mxu0 0.0
        %966 = vmatprep.subr.mxu0 0.0
        %967 = vmatpush1.xpose.msra.mxu0 0.0
        %968 = vmatprep.subr.mxu0 0.0
        %969 = vmatpush1.xpose.msra.mxu0 0.0
        %970 = vmatprep.subr.mxu0 0.0
        %971 = vmatpush1.xpose.msra.mxu0 0.0
        %972 = vmatprep.subr.mxu0 0.0
        %973 = vmatpush1.xpose.msra.mxu0 0.0
        %974 = vmatprep.mubr.f32.mxu0 0.0
        %975 = vmatmul.mubr.f32.gmra.mrb[0].mxu0 %v905
        %v976 = vpop.f32.mrb[0].mxu0
        %v977 = vadd.f32 %v546, %v976
        %v978 = vpop.f32.mrb[0].mxu0
        %979 = vdwg.mxu0
        %vm980 = vcmask 36864
        %v981 = vsel %vm980, %v977, -inf
        %982 = vmax.xlane.f32.xlu0 %v981
        %v983 = vpop.xlane.xlu0 %982
        %v984 = vsub.f32 %v977, %v983
        %v985 = vmul.f32 %v984, 1.442695
        %v986 = vpow.pop %v985
        %v987 = vsel %vm980, %v986, 0.0
        %988 = vadd.xlane.f32.xlu0 %v987
        %v989 = vpop.xlane.xlu0 %988
        %v990 = vrcp.pop %v989
        %v991 = vmul.f32 %v986, %v990
        %vm992 = vcmask 39936
        %v994 = vsel %vm992, %v991, 0
        %vm996 = vcmask 1044480
        %v998 = vsel %vm996, %v903, 0
        %1000 = vmatprep.subr.mxu0 0.0
        %1001 = vmatpush1.msra.mxu0 %v998
        %1002 = vmatprep.subr.mxu0 0.0
        %1003 = vmatpush1.msra.mxu0 0.0
        %1004 = vmatprep.subr.mxu0 0.0
        %1005 = vmatpush1.msra.mxu0 0.0
        %1006 = vmatprep.subr.mxu0 0.0
        %1007 = vmatpush1.msra.mxu0 0.0
        %1008 = vmatprep.subr.mxu0 0.0
        %1009 = vmatpush1.msra.mxu0 0.0
        %1010 = vmatprep.subr.mxu0 0.0
        %1011 = vmatpush1.msra.mxu0 0.0
        %1012 = vmatprep.subr.mxu0 0.0
        %1013 = vmatpush1.msra.mxu0 0.0
        %1014 = vmatprep.subr.mxu0 0.0
        %1015 = vmatpush1.msra.mxu0 0.0
        %1016 = vmatprep.subr.mxu0 0.0
        %1017 = vmatpush1.msra.mxu0 0.0
        %1018 = vmatprep.subr.mxu0 0.0
        %1019 = vmatpush1.msra.mxu0 0.0
        %1020 = vmatprep.subr.mxu0 0.0
        %1021 = vmatpush1.msra.mxu0 0.0
        %1022 = vmatprep.subr.mxu0 0.0
        %1023 = vmatpush1.msra.mxu0 0.0
        %1024 = vmatprep.subr.mxu0 0.0
        %1025 = vmatpush1.msra.mxu0 0.0
        %1026 = vmatprep.subr.mxu0 0.0
        %1027 = vmatpush1.msra.mxu0 0.0
        %1028 = vmatprep.subr.mxu0 0.0
        %1029 = vmatpush1.msra.mxu0 0.0
        %1030 = vmatprep.subr.mxu0 0.0
        %1031 = vmatpush1.msra.mxu0 0.0
        %1032 = vmatprep.subr.mxu0 0.0
        %1033 = vmatpush1.msra.mxu0 0.0
        %1034 = vmatprep.subr.mxu0 0.0
        %1035 = vmatpush1.msra.mxu0 0.0
        %1036 = vmatprep.subr.mxu0 0.0
        %1037 = vmatpush1.msra.mxu0 0.0
        %1038 = vmatprep.subr.mxu0 0.0
        %1039 = vmatpush1.msra.mxu0 0.0
        %1040 = vmatprep.subr.mxu0 0.0
        %1041 = vmatpush1.msra.mxu0 0.0
        %1042 = vmatprep.subr.mxu0 0.0
        %1043 = vmatpush1.msra.mxu0 0.0
        %1044 = vmatprep.subr.mxu0 0.0
        %1045 = vmatpush1.msra.mxu0 0.0
        %1046 = vmatprep.subr.mxu0 0.0
        %1047 = vmatpush1.msra.mxu0 0.0
        %1048 = vmatprep.subr.mxu0 0.0
        %1049 = vmatpush1.msra.mxu0 0.0
        %1050 = vmatprep.subr.mxu0 0.0
        %1051 = vmatpush1.msra.mxu0 0.0
        %1052 = vmatprep.subr.mxu0 0.0
        %1053 = vmatpush1.msra.mxu0 0.0
        %1054 = vmatprep.subr.mxu0 0.0
        %1055 = vmatpush1.msra.mxu0 0.0
        %1056 = vmatprep.subr.mxu0 0.0
        %1057 = vmatpush1.msra.mxu0 0.0
        %1058 = vmatprep.subr.mxu0 0.0
        %1059 = vmatpush1.msra.mxu0 0.0
        %1060 = vmatprep.subr.mxu0 0.0
        %1061 = vmatpush1.msra.mxu0 0.0
        %1062 = vmatprep.subr.mxu0 0.0
        %1063 = vmatpush1.msra.mxu0 0.0
        %1064 = vmatprep.mubr.f32.mxu0 0.0
        %1065 = vmatmul.mubr.f32.gmra.mrb[0].mxu0 %v994
        %v1066 = vpop.f32.mrb[0].mxu0
        %v1067 = vadd.f32 0.0, %v1066
        %v1068 = vpop.f32.mrb[0].mxu0
        %1069 = vdwg.mxu0
        %1070 = vrot.lane.b32.xlu0 %v856, 112
        %v1071 = vpop.permute.xlu0 %1070
        %1072 = vrot.lane.b32.xlu0 %v858, 112
        %v1073 = vpop.permute.xlu0 %1072
        %v1074 = vsel %vm567, %v1071, 0
        %v1076 = vsel %vm567, %v1073, 0
        %1078 = vmatprep.subr.mxu0 0.0
        %1079 = vmatpush1.xpose.msra.mxu0 %v1076
        %1080 = vmatprep.subr.mxu0 0.0
        %1081 = vmatpush1.xpose.msra.mxu0 0.0
        %1082 = vmatprep.subr.mxu0 0.0
        %1083 = vmatpush1.xpose.msra.mxu0 0.0
        %1084 = vmatprep.subr.mxu0 0.0
        %1085 = vmatpush1.xpose.msra.mxu0 0.0
        %1086 = vmatprep.subr.mxu0 0.0
        %1087 = vmatpush1.xpose.msra.mxu0 0.0
        %1088 = vmatprep.subr.mxu0 0.0
        %1089 = vmatpush1.xpose.msra.mxu0 0.0
        %1090 = vmatprep.subr.mxu0 0.0
        %1091 = vmatpush1.xpose.msra.mxu0 0.0
        %1092 = vmatprep.subr.mxu0 0.0
        %1093 = vmatpush1.xpose.msra.mxu0 0.0
        %1094 = vmatprep.subr.mxu0 0.0
        %1095 = vmatpush1.xpose.msra.mxu0 0.0
        %1096 = vmatprep.subr.mxu0 0.0
        %1097 = vmatpush1.xpose.msra.mxu0 0.0
        %1098 = vmatprep.subr.mxu0 0.0
        %1099 = vmatpush1.xpose.msra.mxu0 0.0
        %1100 = vmatprep.subr.mxu0 0.0
        %1101 = vmatpush1.xpose.msra.mxu0 0.0
        %1102 = vmatprep.subr.mxu0 0.0
        %1103 = vmatpush1.xpose.msra.mxu0 0.0
        %1104 = vmatprep.subr.mxu0 0.0
        %1105 = vmatpush1.xpose.msra.mxu0 0.0
        %1106 = vmatprep.subr.mxu0 0.0
        %1107 = vmatpush1.xpose.msra.mxu0 0.0
        %1108 = vmatprep.subr.mxu0 0.0
        %1109 = vmatpush1.xpose.msra.mxu0 0.0
        %1110 = vmatprep.subr.mxu0 0.0
        %1111 = vmatpush1.xpose.msra.mxu0 0.0
        %1112 = vmatprep.subr.mxu0 0.0
        %1113 = vmatpush1.xpose.msra.mxu0 0.0
        %1114 = vmatprep.subr.mxu0 0.0
        %1115 = vmatpush1.xpose.msra.mxu0 0.0
        %1116 = vmatprep.subr.mxu0 0.0
        %1117 = vmatpush1.xpose.msra.mxu0 0.0
        %1118 = vmatprep.subr.mxu0 0.0
        %1119 = vmatpush1.xpose.msra.mxu0 0.0
        %1120 = vmatprep.subr.mxu0 0.0
        %1121 = vmatpush1.xpose.msra.mxu0 0.0
        %1122 = vmatprep.subr.mxu0 0.0
        %1123 = vmatpush1.xpose.msra.mxu0 0.0
        %1124 = vmatprep.subr.mxu0 0.0
        %1125 = vmatpush1.xpose.msra.mxu0 0.0
        %1126 = vmatprep.subr.mxu0 0.0
        %1127 = vmatpush1.xpose.msra.mxu0 0.0
        %1128 = vmatprep.subr.mxu0 0.0
        %1129 = vmatpush1.xpose.msra.mxu0 0.0
        %1130 = vmatprep.subr.mxu0 0.0
        %1131 = vmatpush1.xpose.msra.mxu0 0.0
        %1132 = vmatprep.subr.mxu0 0.0
        %1133 = vmatpush1.xpose.msra.mxu0 0.0
        %1134 = vmatprep.subr.mxu0 0.0
        %1135 = vmatpush1.xpose.msra.mxu0 0.0
        %1136 = vmatprep.subr.mxu0 0.0
        %1137 = vmatpush1.xpose.msra.mxu0 0.0
        %1138 = vmatprep.subr.mxu0 0.0
        %1139 = vmatpush1.xpose.msra.mxu0 0.0
        %1140 = vmatprep.subr.mxu0 0.0
        %1141 = vmatpush1.xpose.msra.mxu0 0.0
        %1142 = vmatprep.mubr.f32.mxu0 0.0
        %1143 = vmatmul.mubr.f32.gmra.mrb[0].mxu0 %v1074
        %v1144 = vpop.f32.mrb[0].mxu0
        %v1145 = vadd.f32 %v546, %v1144
        %v1146 = vpop.f32.mrb[0].mxu0
        %1147 = vdwg.mxu0
        %v1148 = vsel %vm980, %v1145, -inf
        %1149 = vmax.xlane.f32.xlu0 %v1148
        %v1150 = vpop.xlane.xlu0 %1149
        %v1151 = vsub.f32 %v1145, %v1150
        %v1152 = vmul.f32 %v1151, 1.442695
        %v1153 = vpow.pop %v1152
        %v1154 = vsel %vm980, %v1153, 0.0
        %1155 = vadd.xlane.f32.xlu0 %v1154
        %v1156 = vpop.xlane.xlu0 %1155
        %v1157 = vrcp.pop %v1156
        %v1158 = vmul.f32 %v1153, %v1157
        %1159 = vrot.lane.b32.xlu0 %v903, 112
        %v1160 = vpop.permute.xlu0 %1159
        %v1162 = vsel %vm992, %v1158, 0
        %v1164 = vsel %vm996, %v1160, 0
        %1166 = vmatprep.subr.mxu0 0.0
        %1167 = vmatpush1.msra.mxu0 %v1164
        %1168 = vmatprep.subr.mxu0 0.0
        %1169 = vmatpush1.msra.mxu0 0.0
        %1170 = vmatprep.subr.mxu0 0.0
        %1171 = vmatpush1.msra.mxu0 0.0
        %1172 = vmatprep.subr.mxu0 0.0
        %1173 = vmatpush1.msra.mxu0 0.0
        %1174 = vmatprep.subr.mxu0 0.0
        %1175 = vmatpush1.msra.mxu0 0.0
        %1176 = vmatprep.subr.mxu0 0.0
        %1177 = vmatpush1.msra.mxu0 0.0
        %1178 = vmatprep.subr.mxu0 0.0
        %1179 = vmatpush1.msra.mxu0 0.0
        %1180 = vmatprep.subr.mxu0 0.0
        %1181 = vmatpush1.msra.mxu0 0.0
        %1182 = vmatprep.subr.mxu0 0.0
        %1183 = vmatpush1.msra.mxu0 0.0
        %1184 = vmatprep.subr.mxu0 0.0
        %1185 = vmatpush1.msra.mxu0 0.0
        %1186 = vmatprep.subr.mxu0 0.0
        %1187 = vmatpush1.msra.mxu0 0.0
        %1188 = vmatprep.subr.mxu0 0.0
        %1189 = vmatpush1.msra.mxu0 0.0
        %1190 = vmatprep.subr.mxu0 0.0
        %1191 = vmatpush1.msra.mxu0 0.0
        %1192 = vmatprep.subr.mxu0 0.0
        %1193 = vmatpush1.msra.mxu0 0.0
        %1194 = vmatprep.subr.mxu0 0.0
        %1195 = vmatpush1.msra.mxu0 0.0
        %1196 = vmatprep.subr.mxu0 0.0
        %1197 = vmatpush1.msra.mxu0 0.0
        %1198 = vmatprep.subr.mxu0 0.0
        %1199 = vmatpush1.msra.mxu0 0.0
        %1200 = vmatprep.subr.mxu0 0.0
        %1201 = vmatpush1.msra.mxu0 0.0
        %1202 = vmatprep.subr.mxu0 0.0
        %1203 = vmatpush1.msra.mxu0 0.0
        %1204 = vmatprep.subr.mxu0 0.0
        %1205 = vmatpush1.msra.mxu0 0.0
        %1206 = vmatprep.subr.mxu0 0.0
        %1207 = vmatpush1.msra.mxu0 0.0
        %1208 = vmatprep.subr.mxu0 0.0
        %1209 = vmatpush1.msra.mxu0 0.0
        %1210 = vmatprep.subr.mxu0 0.0
        %1211 = vmatpush1.msra.mxu0 0.0
        %1212 = vmatprep.subr.mxu0 0.0
        %1213 = vmatpush1.msra.mxu0 0.0
        %1214 = vmatprep.subr.mxu0 0.0
        %1215 = vmatpush1.msra.mxu0 0.0
        %1216 = vmatprep.subr.mxu0 0.0
        %1217 = vmatpush1.msra.mxu0 0.0
        %1218 = vmatprep.subr.mxu0 0.0
        %1219 = vmatpush1.msra.mxu0 0.0
        %1220 = vmatprep.subr.mxu0 0.0
        %1221 = vmatpush1.msra.mxu0 0.0
        %1222 = vmatprep.subr.mxu0 0.0
        %1223 = vmatpush1.msra.mxu0 0.0
        %1224 = vmatprep.subr.mxu0 0.0
        %1225 = vmatpush1.msra.mxu0 0.0
        %1226 = vmatprep.subr.mxu0 0.0
        %1227 = vmatpush1.msra.mxu0 0.0
        %1228 = vmatprep.subr.mxu0 0.0
        %1229 = vmatpush1.msra.mxu0 0.0
        %1230 = vmatprep.mubr.f32.mxu0 0.0
        %1231 = vmatmul.mubr.f32.gmra.mrb[0].mxu0 %v1162
        %v1232 = vpop.f32.mrb[0].mxu0
        %v1233 = vadd.f32 0.0, %v1232
        %v1234 = vpop.f32.mrb[0].mxu0
        %1235 = vdwg.mxu0
        %1237 = vrot.lane.b32.xlu0 %v1233, 16
        %v1238 = vpop.permute.xlu0 %1237
        %v1240 = vsel %vm567, %v1067, %v1238
        %1242 = vset.pattern.permute.xlu0 0
        %1243 = vperm.xlu0 %1242, %v547
        %v1244 = vpop.permute.xlu0 %1243
        %v1246 = vmul.f32 %v1240, %v1244
        %v1248 = vlaneseq
        %v1249 = vshrl.u32 %v1248, 7
        %v1250 = vsub.s32 0, %v1249
        %v1251 = vrot.slane %v549, %v1250
        %v1253 = vadd.f32 %v899, %v1251
        %v1254 = vpack.c.bf16 %v1246, %v1246
        %v1255 = vld [vmem:[%s8] sm:$0xf]
        %v1256 = vld [vmem:[%s8 + $0x4] sm:$0xf]
        %v1257 = vld [vmem:[%s8 + $0x8] sm:$0xf]
        %v1258 = vld [vmem:[%s8 + $0xc] sm:$0xf]
        %v1263 = vunpack.c.l.b16 %v1255
        %v1264 = vunpack.c.l.b16 %v1256
        %v1265 = vunpack.c.l.b16 %v1257
        %v1266 = vunpack.c.l.b16 %v1258
        %v1267 = vpack.c.b16 %v1264, %v1263
        %v1268 = vpack.c.b16 %v1266, %v1265
        %vm1271 = vcmask 261120
        %v1273 = vsel %vm1271, %v1254, 0
        %1275 = vmatprep.subr.bf16.mxu0 0
        %1276 = vmatpush1.bf16.msra.mxu0 %v1267
        %1277 = vmatprep.subr.bf16.mxu0 0
        %1278 = vmatpush1.bf16.msra.mxu0 %v1268
        %1279 = vmatprep.subr.bf16.mxu0 0
        %1280 = vmatpush1.bf16.msra.mxu0 0
        %1281 = vmatprep.subr.bf16.mxu0 0
        %1282 = vmatpush1.bf16.msra.mxu0 0
        %1283 = vmatprep.subr.bf16.mxu0 0
        %1284 = vmatpush1.bf16.msra.mxu0 0
        %1285 = vmatprep.subr.bf16.mxu0 0
        %1286 = vmatpush1.bf16.msra.mxu0 0
        %1287 = vmatprep.subr.bf16.mxu0 0
        %1288 = vmatpush1.bf16.msra.mxu0 0
        %1289 = vmatprep.subr.bf16.mxu0 0
        %1290 = vmatpush1.bf16.msra.mxu0 0
        %1291 = vmatprep.subr.bf16.mxu0 0
        %1292 = vmatpush1.bf16.msra.mxu0 0
        %1293 = vmatprep.subr.bf16.mxu0 0
        %1294 = vmatpush1.bf16.msra.mxu0 0
        %1295 = vmatprep.subr.bf16.mxu0 0
        %1296 = vmatpush1.bf16.msra.mxu0 0
        %1297 = vmatprep.subr.bf16.mxu0 0
        %1298 = vmatpush1.bf16.msra.mxu0 0
        %1299 = vmatprep.subr.bf16.mxu0 0
        %1300 = vmatpush1.bf16.msra.mxu0 0
        %1301 = vmatprep.subr.bf16.mxu0 0
        %1302 = vmatpush1.bf16.msra.mxu0 0
        %1303 = vmatprep.subr.bf16.mxu0 0
        %1304 = vmatpush1.bf16.msra.mxu0 0
        %1305 = vmatprep.subr.bf16.mxu0 0
        %1306 = vmatpush1.bf16.msra.mxu0 0
        %1307 = vmatprep.mubr.bf16.mxu0 0
        %1308 = vmatmul.mubr.bf16.gmra.mrb[0].mxu0 %v1273
        %v1309 = vpop.f32.mrb[0].mxu0
        %v1310 = vadd.f32 0.0, %v1309
        %v1311 = vpop.f32.mrb[0].mxu0
        %v1312 = vpop.f32.mrb[0].mxu0
        %v1313 = vpop.f32.mrb[0].mxu0
        %1314 = vdwg.mxu0
        %v1315 = vadd.f32 %v1253, %v1310
        %v1316 = vpack.c.bf16 %v550, %v550
        %v1317 = vld [vmem:[%s9] sm:$0xf]
        %v1318 = vld [vmem:[%s9 + $0x4] sm:$0xf]
        %v1319 = vld [vmem:[%s9 + $0x8] sm:$0xf]
        %v1320 = vld [vmem:[%s9 + $0xc] sm:$0xf]
        %v1321 = vlaneseq
        %v1322 = vshrl.u32 %v1321, 7
        %v1323 = vsub.s32 2, %v1322
        %v1324 = vrot.slane %v551, %v1323
        %v1329 = vunpack.c.l.b16 %v1317
        %v1330 = vunpack.c.l.b16 %v1318
        %v1331 = vunpack.c.l.b16 %v1319
        %v1332 = vunpack.c.l.b16 %v1320
        %v1333 = vpack.c.b16 %v1330, %v1329
        %v1334 = vpack.c.b16 %v1332, %v1331
        %v1338 = vsel %vm1271, %v1316, 0
        %1340 = vmatprep.subr.bf16.mxu0 0
        %1341 = vmatpush1.bf16.msra.mxu0 %v1333
        %1342 = vmatprep.subr.bf16.mxu0 0
        %1343 = vmatpush1.bf16.msra.mxu0 %v1334
        %1344 = vmatprep.subr.bf16.mxu0 0
        %1345 = vmatpush1.bf16.msra.mxu0 0
        %1346 = vmatprep.subr.bf16.mxu0 0
        %1347 = vmatpush1.bf16.msra.mxu0 0
        %1348 = vmatprep.subr.bf16.mxu0 0
        %1349 = vmatpush1.bf16.msra.mxu0 0
        %1350 = vmatprep.subr.bf16.mxu0 0
        %1351 = vmatpush1.bf16.msra.mxu0 0
        %1352 = vmatprep.subr.bf16.mxu0 0
        %1353 = vmatpush1.bf16.msra.mxu0 0
        %1354 = vmatprep.subr.bf16.mxu0 0
        %1355 = vmatpush1.bf16.msra.mxu0 0
        %1356 = vmatprep.subr.bf16.mxu0 0
        %1357 = vmatpush1.bf16.msra.mxu0 0
        %1358 = vmatprep.subr.bf16.mxu0 0
        %1359 = vmatpush1.bf16.msra.mxu0 0
        %1360 = vmatprep.subr.bf16.mxu0 0
        %1361 = vmatpush1.bf16.msra.mxu0 0
        %1362 = vmatprep.subr.bf16.mxu0 0
        %1363 = vmatpush1.bf16.msra.mxu0 0
        %1364 = vmatprep.subr.bf16.mxu0 0
        %1365 = vmatpush1.bf16.msra.mxu0 0
        %1366 = vmatprep.subr.bf16.mxu0 0
        %1367 = vmatpush1.bf16.msra.mxu0 0
        %1368 = vmatprep.subr.bf16.mxu0 0
        %1369 = vmatpush1.bf16.msra.mxu0 0
        %1370 = vmatprep.subr.bf16.mxu0 0
        %1371 = vmatpush1.bf16.msra.mxu0 0
        %1372 = vmatprep.mubr.bf16.mxu0 0
        %1373 = vmatmul.mubr.bf16.gmra.mrb[0].mxu0 %v1338
        %v1374 = vpop.f32.mrb[0].mxu0
        %v1375 = vadd.f32 %v1324, %v1374
        %v1376 = vpop.f32.mrb[0].mxu0
        %v1377 = vpop.f32.mrb[0].mxu0
        %v1378 = vpop.f32.mrb[0].mxu0
        %1379 = vdwg.mxu0
        %v1380 = vadd.f32 %v1315, %v1375
        %v1381 = vxor.u32 %v1380, 2147483648
        %v1382 = vmul.f32 %v1381, 1.442695
        %v1383 = vpow.pop %v1382
        %v1384 = vadd.f32 %v1383, 1.0
        %v1385 = vrcp.pop %v1384
        %v1386 = vmul.f32 1.0, %v1385
        %1388 = vrot.lane.b32.xlu0 %v1375, 64
        %v1389 = vpop.permute.xlu0 %1388
        %v1391 = vmul.f32 %v1386, %v1389
        %1393 = vrot.lane.b32.xlu0 %v1391, 64
        %v1394 = vpop.permute.xlu0 %1393
        %v1396 = vadd.f32 %v1315, %v1394
        %v1397 = vtanh.pop %v1396
        %v1398 = vsub.f32 1.0, %v1386
        %1400 = vrot.lane.b32.xlu0 %v1397, 96
        %v1401 = vpop.permute.xlu0 %1400
        %v1403 = vmul.f32 %v1398, %v1401
        %1405 = vrot.lane.b32.xlu0 %v550, 32
        %v1406 = vpop.permute.xlu0 %1405
        %v1408 = vmul.f32 %v1386, %v1406
        %v1409 = vadd.f32 %v1403, %v1408
        %1411 = vset.pattern.permute.xlu0 0
        %1412 = vperm.xlu0 %1411, %v548
        %v1413 = vpop.permute.xlu0 %1412
        %v1415 = vmul.f32 %v1409, %v1413
        %1417 = vrot.lane.b32.xlu0 %v1415, 96
        %v1418 = vpop.permute.xlu0 %1417
        %vm1420 = vcmask 258048
        %1421 = vst.msk [vmem:[%s539] sm:$0x1f] %vm1420, %v1418
        %v1422 = vpack.c.bf16 %v1415, %v1415
        %v1423 = vld [vmem:[%s10] sm:$0xf]
        %v1424 = vld [vmem:[%s10 + $0x4] sm:$0xf]
        %v1425 = vld [vmem:[%s10 + $0x8] sm:$0xf]
        %v1426 = vld [vmem:[%s10 + $0xc] sm:$0xf]
        %v1427 = vlaneseq
        %v1428 = vshrl.u32 %v1427, 7
        %v1429 = vsub.s32 3, %v1428
        %v1430 = vrot.slane %v551, %v1429
        %1432 = vrot.lane.b32.xlu0 %v1422, 96
        %v1433 = vpop.permute.xlu0 %1432
        %v1438 = vunpack.c.l.b16 %v1423
        %v1439 = vunpack.c.l.b16 %v1424
        %v1440 = vunpack.c.l.b16 %v1425
        %v1441 = vunpack.c.l.b16 %v1426
        %v1442 = vpack.c.b16 %v1439, %v1438
        %v1443 = vpack.c.b16 %v1441, %v1440
        %v1447 = vsel %vm1271, %v1433, 0
        %1449 = vmatprep.subr.bf16.mxu0 0
        %1450 = vmatpush1.bf16.msra.mxu0 %v1442
        %1451 = vmatprep.subr.bf16.mxu0 0
        %1452 = vmatpush1.bf16.msra.mxu0 %v1443
        %1453 = vmatprep.subr.bf16.mxu0 0
        %1454 = vmatpush1.bf16.msra.mxu0 0
        %1455 = vmatprep.subr.bf16.mxu0 0
        %1456 = vmatpush1.bf16.msra.mxu0 0
        %1457 = vmatprep.subr.bf16.mxu0 0
        %1458 = vmatpush1.bf16.msra.mxu0 0
        %1459 = vmatprep.subr.bf16.mxu0 0
        %1460 = vmatpush1.bf16.msra.mxu0 0
        %1461 = vmatprep.subr.bf16.mxu0 0
        %1462 = vmatpush1.bf16.msra.mxu0 0
        %1463 = vmatprep.subr.bf16.mxu0 0
        %1464 = vmatpush1.bf16.msra.mxu0 0
        %1465 = vmatprep.subr.bf16.mxu0 0
        %1466 = vmatpush1.bf16.msra.mxu0 0
        %1467 = vmatprep.subr.bf16.mxu0 0
        %1468 = vmatpush1.bf16.msra.mxu0 0
        %1469 = vmatprep.subr.bf16.mxu0 0
        %1470 = vmatpush1.bf16.msra.mxu0 0
        %1471 = vmatprep.subr.bf16.mxu0 0
        %1472 = vmatpush1.bf16.msra.mxu0 0
        %1473 = vmatprep.subr.bf16.mxu0 0
        %1474 = vmatpush1.bf16.msra.mxu0 0
        %1475 = vmatprep.subr.bf16.mxu0 0
        %1476 = vmatpush1.bf16.msra.mxu0 0
        %1477 = vmatprep.subr.bf16.mxu0 0
        %1478 = vmatpush1.bf16.msra.mxu0 0
        %1479 = vmatprep.subr.bf16.mxu0 0
        %1480 = vmatpush1.bf16.msra.mxu0 0
        %1481 = vmatprep.mubr.bf16.mxu0 0
        %1482 = vmatmul.mubr.bf16.gmra.mrb[0].mxu0 %v1447
        %v1483 = vpop.f32.mrb[0].mxu0
        %v1484 = vadd.f32 %v1430, %v1483
        %v1485 = vpop.f32.mrb[0].mxu0
        %v1486 = vpop.f32.mrb[0].mxu0
        %v1487 = vpop.f32.mrb[0].mxu0
        %1488 = vdwg.mxu0
        %v1489 = vmul.f32 %v1484, %v1413
        %1490 = vst [vmem:[%s543] sm:$0x1f] %v1489
        %p1491 = scmp.lt.s32.totalorder %s26, 1
        %s1492 = scalar_select %p1491, %s26, 1
        %s1493 = smul.addr %s1492, 8
        %s1494 = scalar_lea.vmem %s12, %s1493
        %p1495 = scmp.lt.s32.totalorder %s26, 1
        %s1496 = scalar_select %p1495, %s26, 1
        %s1497 = smul.addr %s1496, 8
        %s1498 = scalar_lea.vmem %s13, %s1497
        // Predicated region
        $region73: #{tpu_custom_call.1} parent=67 // pred_check
          %p1499 = pneg %p326
        $region74: #{tpu_custom_call.1} parent=67 // pred_check_branch
          %1501 = sbr.rel (%p1499) target = $region76
        $region75: #{tpu_custom_call.1} parent=67 // pred_region
          _
        $region76: #{tpu_custom_call.1} parent=67 // pred_fallthru
          _
        // Predicated region
        $region77: #{tpu_custom_call.1} parent=67 // pred_check
          %p1502 = pneg %p352
        $region78: #{tpu_custom_call.1} parent=67 // pred_check_branch
          %1504 = sbr.rel (%p1502) target = $region80
        $region79: #{tpu_custom_call.1} parent=67 // pred_region
          _
        $region80: #{tpu_custom_call.1} parent=67 // pred_fallthru
          _
      $region68: #{tpu_custom_call.1} parent=5 // pred_fallthru
        _
      %p1505 = scmp.le.s32.totalorder 2, %s21
      // Predicated region
      $region81: #{tpu_custom_call.1} parent=5 // pred_check
        %p1506 = pneg %p1505
      $region82: #{tpu_custom_call.1} parent=5 // pred_check_branch
        %1508 = sbr.rel (%p1506) target = $region84
      $region83: #{tpu_custom_call.1} parent=5 // pred_region
        %s1509 = ssub.s32 %s21, 2
        // Predicated region
        $region85: #{tpu_custom_call.1} parent=83 // pred_check
          %p1510 = pneg %p332
        $region86: #{tpu_custom_call.1} parent=83 // pred_check_branch
          %1512 = sbr.rel (%p1510) target = $region88
        $region87: #{tpu_custom_call.1} parent=83 // pred_region
          %p1513 = scmp.lt.s32.totalorder %s27, 1
          %s1514 = scalar_select %p1513, %s27, 1
          %s1515 = smul.addr %s1514, 8
          %s1516 = scalar_lea.vmem %s12, %s1515
        $region88: #{tpu_custom_call.1} parent=83 // pred_fallthru
          _
        // Predicated region
        $region89: #{tpu_custom_call.1} parent=83 // pred_check
          %p1517 = pneg %p358
        $region90: #{tpu_custom_call.1} parent=83 // pred_check_branch
          %1519 = sbr.rel (%p1517) target = $region92
        $region91: #{tpu_custom_call.1} parent=83 // pred_region
          %p1520 = scmp.lt.s32.totalorder %s27, 1
          %s1521 = scalar_select %p1520, %s27, 1
          %s1522 = smul.addr %s1521, 8
          %s1523 = scalar_lea.vmem %s13, %s1522
        $region92: #{tpu_custom_call.1} parent=83 // pred_fallthru
          _
      $region84: #{tpu_custom_call.1} parent=5 // pred_fallthru
        _
    $region6: #{tpu_custom_call.1} parent=1 // loop_footer
      %s25 = sadd.s32 1, %s21
    $region7: #{tpu_custom_call.1} parent=1 // loop_footer_branch
      %20 = sbr.rel target = $region3
    $region8: #{tpu_custom_call.1} parent=1 // loop_exit
      _
    %1524 = vsyncpa [#allocation3], 1
    %s1525 = scalar_lea.sflag [#allocation3], 1
    %1526 = vsyncpa %s1525, 1

</llo_original>
